<compile_context>
chip_gen: v7x
topology: tpu7x:2x2x1
jax: 0.10.0
libtpu: 0.0.40
codegen_flags: <defaults>
</compile_context>

<pallas_src>
import math

import jax
import jax.numpy as jnp
from jax.experimental import pallas as pl
from jax.experimental.pallas import tpu as pltpu

LANE = 128


def _round_up(v, m):
    return ((v + m - 1) // m) * m


def linear_kernel(x_ref, w_ref, b_ref, o_ref, acc_ref):
    """One (batch-tile, K-tile) step of  out = x @ W^T + b.

    x_ref  : (tm, tk)     activations (bf16 or f32)
    w_ref  : (c_pad, tk)  weight in PyTorch (out_features, in_features) layout
    b_ref  : (1, c_pad)   f32 bias (zero-padded classes)
    o_ref  : (tm, c_pad)  f32 output tile
    acc_ref: (tm, c_pad)  f32 VMEM accumulator (lives across the K axis)
    """
    k = pl.program_id(1)

    @pl.when(k == 0)
    def _init():
        acc_ref[...] = jnp.zeros_like(acc_ref)

    # x @ W^T on the MXU with f32 accumulation.
    acc_ref[...] += jax.lax.dot_general(
        x_ref[...],
        w_ref[...],
        dimension_numbers=(((1,), (1,)), ((), ())),
        preferred_element_type=jnp.float32,
    )

    @pl.when(k == pl.num_programs(1) - 1)
    def _store():
        o_ref[...] = (acc_ref[...] + b_ref[...]).astype(o_ref.dtype)


def _choose_tiles(B, D, c_pad, in_bytes, out_bytes, *, block_cap, vmem_budget):
    """D-/dtype-aware tile selection against a VMEM budget."""
    sublane = 32 // in_bytes  # 8 for f32, 16 for bf16

    # ---- K (reduction) tiling: only when the resident weight would hog VMEM,
    # and only with tk an exact divisor of D (keeps the ragged-batch trick
    # exact: garbage columns must never enter the accumulation).
    tk = D
    weight_budget = vmem_budget // 2
    if c_pad * D * in_bytes > weight_budget and D % LANE == 0:
        for cand_nk in (2, 4, 8, 16, 32, 64, 128, 256):
            if D % cand_nk == 0 and (D // cand_nk) % LANE == 0:
                cand_tk = D // cand_nk
                # K-streamed weight tiles are double-buffered.
                if 2 * c_pad * cand_tk * in_bytes <= weight_budget:
                    tk = cand_tk
                    break
    nk = D // tk
    # TODO(synk): pathological case (huge D not divisible by 128) may still
    # not fit VMEM; would need an Element/ragged K path.

    # ---- batch tile: largest that fits the remaining budget, at least two
    # tiles when B is large (v7x 2-core sharding), sublane aligned, preferably
    # a multiple of 256.
    w_bufs = 1 if nk == 1 else 2
    remaining = vmem_budget - w_bufs * c_pad * tk * in_bytes - 2 * c_pad * 4
    per_row = (2 * tk * in_bytes          # activation double-buffer
               + 2 * c_pad * out_bytes    # output double-buffer
               + c_pad * 4)               # f32 accumulator scratch
    tm_cap = max(sublane, remaining // per_row)

    tm = min(block_cap, tm_cap, _round_up(pl.cdiv(B, 2), sublane))
    if tm >= 256:
        tm = (tm // 256) * 256
    else:
        tm = max(sublane, (tm // sublane) * sublane)
    return tm, tk, nk


def linear_model_forward(x, weight, bias, *, use_bf16=True, block_b=1024,
                         vmem_budget_bytes=24 << 20):
    """Forward pass of LinearModel.

    x      : (B, C, H, W) float32  (NCHW, like PyTorch)
    weight : (num_classes, D) float32  (PyTorch nn.Linear layout, D = C*H*W)
    bias   : (num_classes,) float32
    returns: (B, num_classes) float32
    """
    B = x.shape[0]
    D = math.prod(x.shape[1:])
    num_classes = weight.shape[0]
    out_dtype = jnp.float32

    c_pad = _round_up(num_classes, LANE)  # lane-dense output width

    # Flatten exactly like nn.Flatten (row-major over C,H,W).  NO batch pad:
    # the ragged last tile is handled by Pallas (OOB output writes dropped).
    x2d = x.reshape(B, D)

    in_dtype = jnp.bfloat16 if use_bf16 else x2d.dtype
    x2d = x2d.astype(in_dtype)
    # Zero weight rows / zero bias in the padded class columns => exact zeros.
    w_p = jnp.pad(weight, ((0, c_pad - num_classes), (0, 0))).astype(in_dtype)
    b_p = jnp.pad(bias, (0, c_pad - num_classes)).reshape(1, c_pad).astype(jnp.float32)

    in_bytes = jnp.dtype(in_dtype).itemsize
    out_bytes = jnp.dtype(out_dtype).itemsize

    tm, tk, nk = _choose_tiles(B, D, c_pad, in_bytes, out_bytes,
                               block_cap=block_b, vmem_budget=vmem_budget_bytes)
    nb = pl.cdiv(B, tm)
    grid = (nb, nk)

    # Explicit scoped-VMEM request: worst-case footprint (double-buffered
    # weight) + headroom, above v5e's 16 MiB default, below v7x's 64 MiB phys.
    footprint = (2 * c_pad * tk * in_bytes
                 + 2 * tm * tk * in_bytes
                 + 2 * tm * c_pad * out_bytes
                 + tm * c_pad * 4
                 + 2 * c_pad * 4)
    vmem_limit = int(min(56 << 20, max(24 << 20, footprint + (4 << 20))))

    cost = pl.CostEstimate(
        flops=2 * B * D * c_pad,
        transcendentals=0,
        bytes_accessed=in_bytes * (B * D + c_pad * D)
                       + out_bytes * B * c_pad + 4 * c_pad,
    )

    def _run(single_buffer_weight):
        w_kwargs = {}
        if single_buffer_weight:
            # Resident weight (constant index_map): one buffer is enough,
            # the saved VMEM buys a larger batch tile.
            w_kwargs["pipeline_mode"] = pl.Buffered(1)
        return pl.pallas_call(
            linear_kernel,
            out_shape=jax.ShapeDtypeStruct((B, c_pad), out_dtype),
            grid=grid,
            in_specs=[
                pl.BlockSpec((tm, tk), lambda i, k: (i, k)),       # streamed x
                pl.BlockSpec((c_pad, tk), lambda i, k: (0, k), **w_kwargs),
                pl.BlockSpec((1, c_pad), lambda i, k: (0, 0)),     # resident bias
            ],
            out_specs=pl.BlockSpec((tm, c_pad), lambda i, k: (i, 0)),
            scratch_shapes=[pltpu.VMEM((tm, c_pad), jnp.float32)],
            compiler_params=pltpu.CompilerParams(
                dimension_semantics=("parallel", "arbitrary"),
                vmem_limit_bytes=vmem_limit,
            ),
            cost_estimate=cost,
        )(x2d, w_p, b_p)

    try:
        out = _run(single_buffer_weight=(nk == 1))
    except Exception:
        # Fallback if single-buffering via pl.Buffered(1) is not supported.
        out = _run(single_buffer_weight=False)

    return out[:, :num_classes]


if __name__ == "__main__":
    # Small shapes consistent with the module: NCHW image input, flattened.
    B, C, H, W = 2, 4, 16, 16
    input_dim = C * H * W          # 1024
    num_classes = 10

    key = jax.random.PRNGKey(0)
    kx, kw, kb = jax.random.split(key, 3)

    x = jax.random.normal(kx, (B, C, H, W), dtype=jnp.float32)
    # Deterministic params (mimics nn.Linear's uniform(-1/sqrt(D), 1/sqrt(D))).
    bound = 1.0 / (input_dim ** 0.5)
    weight = jax.random.uniform(kw, (num_classes, input_dim),
                                minval=-bound, maxval=bound, dtype=jnp.float32)
    bias = jax.random.uniform(kb, (num_classes,),
                              minval=-bound, maxval=bound, dtype=jnp.float32)

    out = linear_model_forward(x, weight, bias)
    out = jax.block_until_ready(out)

    # References: same bf16-in / f32-accumulate recipe (tight tolerance) and
    # the pure f32 module semantics (loose tolerance for the bf16 cast).
    x2d = x.reshape(B, -1)
    ref_bf16 = jnp.dot(x2d.astype(jnp.bfloat16), weight.astype(jnp.bfloat16).T,
                       preferred_element_type=jnp.float32) + bias
    ref_f32 = x2d @ weight.T + bias

    assert out.shape == (B, num_classes)
    assert out.dtype == jnp.float32
    assert jnp.allclose(out, ref_bf16, atol=5e-3, rtol=5e-3)
    assert jnp.allclose(out, ref_f32, atol=3e-2, rtol=3e-2)

    print("KERNEL_OK")
</pallas_src>

<mosaic_0001>
module attributes {stable_mosaic.version = 11 : i64} {
  func.func @linear_kernel(%arg0: i32, %arg1: i32, %arg2: memref<16x1024xbf16, #tpu.memory_space<vmem>>, %arg3: memref<128x1024xbf16, #tpu.memory_space<vmem>>, %arg4: memref<1x128xf32, #tpu.memory_space<vmem>>, %arg5: memref<16x128xf32, #tpu.memory_space<vmem>>, %arg6: memref<16x128xf32, #tpu.memory_space<vmem>>) attributes {dimension_semantics = [#tpu.dimension_semantics<parallel>, #tpu.dimension_semantics<arbitrary>], iteration_bounds = array<i64: 1, 1>, scalar_prefetch = 0 : i64, scratch_operands = 1 : i64, tpu.core_type = #tpu.core_type<tc>, window_params = [{transform_indices = @transform_0, window_bounds = array<i64: 16, 1024>}, {pipeline_mode = #tpu.pipeline_mode<synchronous>, transform_indices = @transform_1, window_bounds = array<i64: 128, 1024>}, {pipeline_mode = #tpu.pipeline_mode<synchronous>, transform_indices = @transform_2, window_bounds = array<i64: 1, 128>}, {transform_indices = @transform_3, window_bounds = array<i64: 16, 128>}]} {
    %c0_i32 = arith.constant 0 : i32
    %0 = arith.cmpi eq, %arg1, %c0_i32 : i32
    %1 = arith.extui %0 : i1 to i32
    %c0_i32_0 = arith.constant 0 : i32
    %2 = arith.cmpi ne, %1, %c0_i32_0 : i32
    scf.if %2 {
      %cst_10 = arith.constant 0.000000e+00 : f32
      %12 = vector.broadcast %cst_10 : f32 to vector<16x128xf32>
      %c0_11 = arith.constant 0 : index
      %c0_12 = arith.constant 0 : index
      %13 = vector.load %arg6[%c0_11, %c0_12] : memref<16x128xf32, #tpu.memory_space<vmem>>, vector<16x128xf32>
      tpu.vector_store %arg6[%c0_11, %c0_12], %12 {strides = array<i32>} : memref<16x128xf32, #tpu.memory_space<vmem>>, vector<16x128xf32>,
    } else {
    }
    %c0 = arith.constant 0 : index
    %c0_1 = arith.constant 0 : index
    %3 = vector.load %arg6[%c0, %c0_1] : memref<16x128xf32, #tpu.memory_space<vmem>>, vector<16x128xf32>
    %c0_2 = arith.constant 0 : index
    %c0_3 = arith.constant 0 : index
    %4 = vector.load %arg2[%c0_2, %c0_3] : memref<16x1024xbf16, #tpu.memory_space<vmem>>, vector<16x1024xbf16>
    %c0_4 = arith.constant 0 : index
    %c0_5 = arith.constant 0 : index
    %5 = vector.load %arg3[%c0_4, %c0_5] : memref<128x1024xbf16, #tpu.memory_space<vmem>>, vector<128x1024xbf16>
    %cst = arith.constant dense<0.000000e+00> : vector<16x128xf32>
    %6 = tpu.matmul %4, %5, %cst {dimension_numbers = #tpu.dot_dimension_numbers<[1], [1], [0], [0], [0, 0, 1, 0], [], []>} : vector<16x1024xbf16>, vector<128x1024xbf16>, vector<16x128xf32> -> vector<16x128xf32>
    %7 = arith.addf %3, %6 : vector<16x128xf32>
    %c0_6 = arith.constant 0 : index
    %c0_7 = arith.constant 0 : index
    %8 = vector.load %arg6[%c0_6, %c0_7] : memref<16x128xf32, #tpu.memory_space<vmem>>, vector<16x128xf32>
    tpu.vector_store %arg6[%c0_6, %c0_7], %7 {strides = array<i32>} : memref<16x128xf32, #tpu.memory_space<vmem>>, vector<16x128xf32>,
    %c0_i32_8 = arith.constant 0 : i32
    %9 = arith.cmpi eq, %arg1, %c0_i32_8 : i32
    %10 = arith.extui %9 : i1 to i32
    %c0_i32_9 = arith.constant 0 : i32
    %11 = arith.cmpi ne, %10, %c0_i32_9 : i32
    scf.if %11 {
      %c0_10 = arith.constant 0 : index
      %c0_11 = arith.constant 0 : index
      %12 = vector.load %arg6[%c0_10, %c0_11] : memref<16x128xf32, #tpu.memory_space<vmem>>, vector<16x128xf32>
      %c0_12 = arith.constant 0 : index
      %c0_13 = arith.constant 0 : index
      %13 = vector.load %arg4[%c0_12, %c0_13] : memref<1x128xf32, #tpu.memory_space<vmem>>, vector<1x128xf32>
      %14 = vector.broadcast %13 : vector<1x128xf32> to vector<16x128xf32>
      %15 = arith.addf %12, %14 : vector<16x128xf32>
      %c0_14 = arith.constant 0 : index
      %c0_15 = arith.constant 0 : index
      %16 = vector.load %arg5[%c0_14, %c0_15] : memref<16x128xf32, #tpu.memory_space<vmem>>, vector<16x128xf32>
      tpu.vector_store %arg5[%c0_14, %c0_15], %15 {strides = array<i32>} : memref<16x128xf32, #tpu.memory_space<vmem>>, vector<16x128xf32>,
    } else {
    }
    return
  }
  func.func @transform_0(%arg0: i32, %arg1: i32) -> (i32, i32) {
    %c0_i32 = arith.constant 0 : i32
    return %arg0, %arg1 : i32, i32
  }
  func.func @transform_1(%arg0: i32, %arg1: i32) -> (i32, i32) {
    %c0_i32 = arith.constant 0 : i32
    %c0_i32_0 = arith.constant 0 : i32
    return %c0_i32, %arg1 : i32, i32
  }
  func.func @transform_2(%arg0: i32, %arg1: i32) -> (i32, i32) {
    %c0_i32 = arith.constant 0 : i32
    %c0_i32_0 = arith.constant 0 : i32
    %c0_i32_1 = arith.constant 0 : i32
    return %c0_i32, %c0_i32_0 : i32, i32
  }
  func.func @transform_3(%arg0: i32, %arg1: i32) -> (i32, i32) {
    %c0_i32 = arith.constant 0 : i32
    %c0_i32_0 = arith.constant 0 : i32
    return %arg0, %c0_i32 : i32, i32
  }
}

module attributes {stable_mosaic.version = 11 : i64} {
  func.func @linear_kernel(%arg0: i32, %arg1: i32, %arg2: memref<16x1024xbf16, #tpu.memory_space<vmem>>, %arg3: memref<128x1024xbf16, #tpu.memory_space<vmem>>, %arg4: memref<1x128xf32, #tpu.memory_space<vmem>>, %arg5: memref<16x128xf32, #tpu.memory_space<vmem>>, %arg6: memref<16x128xf32, #tpu.memory_space<vmem>>) attributes {dimension_semantics = [#tpu.dimension_semantics<parallel>, #tpu.dimension_semantics<arbitrary>], iteration_bounds = array<i64: 1, 1>, scalar_prefetch = 0 : i64, scratch_operands = 1 : i64, tpu.core_type = #tpu.core_type<tc>, window_params = [{transform_indices = @transform_0, window_bounds = array<i64: 16, 1024>}, {transform_indices = @transform_1, window_bounds = array<i64: 128, 1024>}, {pipeline_mode = #tpu.pipeline_mode<synchronous>, transform_indices = @transform_2, window_bounds = array<i64: 1, 128>}, {transform_indices = @transform_3, window_bounds = array<i64: 16, 128>}]} {
    %c0_i32 = arith.constant 0 : i32
    %0 = arith.cmpi eq, %arg1, %c0_i32 : i32
    %1 = arith.extui %0 : i1 to i32
    %c0_i32_0 = arith.constant 0 : i32
    %2 = arith.cmpi ne, %1, %c0_i32_0 : i32
    scf.if %2 {
      %cst_10 = arith.constant 0.000000e+00 : f32
      %12 = vector.broadcast %cst_10 : f32 to vector<16x128xf32>
      %c0_11 = arith.constant 0 : index
      %c0_12 = arith.constant 0 : index
      %13 = vector.load %arg6[%c0_11, %c0_12] : memref<16x128xf32, #tpu.memory_space<vmem>>, vector<16x128xf32>
      tpu.vector_store %arg6[%c0_11, %c0_12], %12 {strides = array<i32>} : memref<16x128xf32, #tpu.memory_space<vmem>>, vector<16x128xf32>,
    } else {
    }
    %c0 = arith.constant 0 : index
    %c0_1 = arith.constant 0 : index
    %3 = vector.load %arg6[%c0, %c0_1] : memref<16x128xf32, #tpu.memory_space<vmem>>, vector<16x128xf32>
    %c0_2 = arith.constant 0 : index
    %c0_3 = arith.constant 0 : index
    %4 = vector.load %arg2[%c0_2, %c0_3] : memref<16x1024xbf16, #tpu.memory_space<vmem>>, vector<16x1024xbf16>
    %c0_4 = arith.constant 0 : index
    %c0_5 = arith.constant 0 : index
    %5 = vector.load %arg3[%c0_4, %c0_5] : memref<128x1024xbf16, #tpu.memory_space<vmem>>, vector<128x1024xbf16>
    %cst = arith.constant dense<0.000000e+00> : vector<16x128xf32>
    %6 = tpu.matmul %4, %5, %cst {dimension_numbers = #tpu.dot_dimension_numbers<[1], [1], [0], [0], [0, 0, 1, 0], [], []>} : vector<16x1024xbf16>, vector<128x1024xbf16>, vector<16x128xf32> -> vector<16x128xf32>
    %7 = arith.addf %3, %6 : vector<16x128xf32>
    %c0_6 = arith.constant 0 : index
    %c0_7 = arith.constant 0 : index
    %8 = vector.load %arg6[%c0_6, %c0_7] : memref<16x128xf32, #tpu.memory_space<vmem>>, vector<16x128xf32>
    tpu.vector_store %arg6[%c0_6, %c0_7], %7 {strides = array<i32>} : memref<16x128xf32, #tpu.memory_space<vmem>>, vector<16x128xf32>,
    %c0_i32_8 = arith.constant 0 : i32
    %9 = arith.cmpi eq, %arg1, %c0_i32_8 : i32
    %10 = arith.extui %9 : i1 to i32
    %c0_i32_9 = arith.constant 0 : i32
    %11 = arith.cmpi ne, %10, %c0_i32_9 : i32
    scf.if %11 {
      %c0_10 = arith.constant 0 : index
      %c0_11 = arith.constant 0 : index
      %12 = vector.load %arg6[%c0_10, %c0_11] : memref<16x128xf32, #tpu.memory_space<vmem>>, vector<16x128xf32>
      %c0_12 = arith.constant 0 : index
      %c0_13 = arith.constant 0 : index
      %13 = vector.load %arg4[%c0_12, %c0_13] : memref<1x128xf32, #tpu.memory_space<vmem>>, vector<1x128xf32>
      %14 = vector.broadcast %13 : vector<1x128xf32> to vector<16x128xf32>
      %15 = arith.addf %12, %14 : vector<16x128xf32>
      %c0_14 = arith.constant 0 : index
      %c0_15 = arith.constant 0 : index
      %16 = vector.load %arg5[%c0_14, %c0_15] : memref<16x128xf32, #tpu.memory_space<vmem>>, vector<16x128xf32>
      tpu.vector_store %arg5[%c0_14, %c0_15], %15 {strides = array<i32>} : memref<16x128xf32, #tpu.memory_space<vmem>>, vector<16x128xf32>,
    } else {
    }
    return
  }
  func.func @transform_0(%arg0: i32, %arg1: i32) -> (i32, i32) {
    %c0_i32 = arith.constant 0 : i32
    return %arg0, %arg1 : i32, i32
  }
  func.func @transform_1(%arg0: i32, %arg1: i32) -> (i32, i32) {
    %c0_i32 = arith.constant 0 : i32
    %c0_i32_0 = arith.constant 0 : i32
    return %c0_i32, %arg1 : i32, i32
  }
  func.func @transform_2(%arg0: i32, %arg1: i32) -> (i32, i32) {
    %c0_i32 = arith.constant 0 : i32
    %c0_i32_0 = arith.constant 0 : i32
    %c0_i32_1 = arith.constant 0 : i32
    return %c0_i32, %c0_i32_0 : i32, i32
  }
  func.func @transform_3(%arg0: i32, %arg1: i32) -> (i32, i32) {
    %c0_i32 = arith.constant 0 : i32
    %c0_i32_0 = arith.constant 0 : i32
    return %arg0, %c0_i32 : i32, i32
  }
}

</mosaic_0001>

<llo_original>
// kernel: tpu_custom_call.1
$region0: #{tpu_custom_call.1}
  #allocation0 [shape = 'u32[]', space=smem, size = 0x4, offset = 0x4, fixed_abs, tag = 'smem constant byte address 0x4 - core index']
  #allocation1 [shape = 'u32[144,128]{1,0:T(1,128)}', space=vmem, size = 0x12000, scoped, tag = 'internal scratch']
  #allocation2 [shape = 'f32[16,128]{1,0:T(8,128)}', space=vmem, size = 0x2000, scoped, tag = 'scratch operand']
  %s0 = inlined_call_operand.hbm [shape: bf16[2,1024], index: 0, kind: input, shape index: {}]
  %s1 = inlined_call_operand.hbm [shape: bf16[128,1024], index: 1, kind: input, shape index: {}]
  %s2 = inlined_call_operand.vmem [shape: f32[1,128], index: 2, kind: input, shape index: {}]
  %s3 = inlined_call_operand.hbm [shape: f32[2,128], index: 3, kind: output, shape index: {}]
  %s4 = sld [smem:[#allocation0]]
  $region38: #{tpu_custom_call.1} parent=0
    _
  %s6 = ssub.s32 1, %s4
  %s7 = scalar_select 0, %s6, %s4
  $region1: #{tpu_custom_call.1} parent=0
    #allocation3 [shape = 'u8[32768]{0}', space=vmem, size = 0x8000, scoped, tag = 'input window, operand 0, single buffered']
    #allocation4 [shape = 's32[1]{0}', space=sflag, size = 0x4, scoped, tag = 'scoped memory for tpu_custom_call.1']
    #allocation5 [shape = 's32[1]{0}', space=sflag, size = 0x4, scoped, tag = 'scoped memory for tpu_custom_call.1']
    #allocation6 [shape = 'u8[262144]{0}', space=vmem, size = 0x40000, scoped, tag = 'input window, operand 1, single buffered']
    #allocation7 [shape = 's32[1]{0}', space=sflag, size = 0x4, scoped, tag = 'scoped memory for tpu_custom_call.1']
    #allocation8 [shape = 'u8[8192]{0}', space=vmem, size = 0x2000, scoped, tag = 'output window, operand 0, single buffered']
    %8 = vsyncpa [#allocation4], 0
    %9 = vsyncpa [#allocation7], 0
    %10 = vsyncpa [#allocation5], 0
    // Predicated region
    $region2: #{tpu_custom_call.1} parent=1 // pred_check
      _
    $region3: #{tpu_custom_call.1} parent=1 // pred_check_branch
      %12 = sbr.rel (0) target = $region5
    $region4: #{tpu_custom_call.1} parent=1 // pred_region
      %s14 = ssub.s32 1024, 128
      %15 = vsyncadd [#allocation4], %s14
      %s16 = sshll.u32 [#allocation3], 4
      %s17 = int_to_ptr.vmem [resolvable:$true] %s16
      %22 = dma.hbm_to_vmem [thread:$0]  %s0, 128, %s17, [#allocation4], 128, 128, 8
    $region5: #{tpu_custom_call.1} parent=1 // pred_fallthru
      _
    // Predicated region
    $region6: #{tpu_custom_call.1} parent=1 // pred_check
      _
    $region7: #{tpu_custom_call.1} parent=1 // pred_check_branch
      %24 = sbr.rel (0) target = $region9
    $region8: #{tpu_custom_call.1} parent=1 // pred_region
      %s26 = ssub.s32 8192, 8192
      %27 = vsyncadd [#allocation7], %s26
      %s28 = sshll.u32 [#allocation6], 4
      %s29 = int_to_ptr.vmem [resolvable:$true] %s28
      %34 = dma.hbm_to_vmem [thread:$0]  %s1, 8192, %s29, [#allocation7], 512, 512, 32
    $region9: #{tpu_custom_call.1} parent=1 // pred_fallthru
      _
    // Predicated region
    $region10: #{tpu_custom_call.1} parent=1 // pred_check
      _
    $region11: #{tpu_custom_call.1} parent=1 // pred_check_branch
      %36 = sbr.rel (0) target = $region13
    $region12: #{tpu_custom_call.1} parent=1 // pred_region
      _
    $region13: #{tpu_custom_call.1} parent=1 // pred_fallthru
      _
    // Predicated region
    $region14: #{tpu_custom_call.1} parent=1 // pred_check
      _
    $region15: #{tpu_custom_call.1} parent=1 // pred_check_branch
      %38 = sbr.rel (0) target = $region17
    $region16: #{tpu_custom_call.1} parent=1 // pred_region
      %39 = dma.done [#allocation4], 1024
    $region17: #{tpu_custom_call.1} parent=1 // pred_fallthru
      _
    // Predicated region
    $region18: #{tpu_custom_call.1} parent=1 // pred_check
      _
    $region19: #{tpu_custom_call.1} parent=1 // pred_check_branch
      %41 = sbr.rel (0) target = $region21
    $region20: #{tpu_custom_call.1} parent=1 // pred_region
      %42 = dma.done [#allocation7], 8192
    $region21: #{tpu_custom_call.1} parent=1 // pred_fallthru
      _
    %p44 = scmp.eq.s32.totalorder 0, 0
    // Predicated region
    $region22: #{tpu_custom_call.1} parent=1 // pred_check
      %p45 = pneg %p44
    $region23: #{tpu_custom_call.1} parent=1 // pred_check_branch
      %47 = sbr.rel (%p45) target = $region25
    $region24: #{tpu_custom_call.1} parent=1 // pred_region
      %48 = vst [vmem:[#allocation2] sm:$0xff] 0.0
      %49 = vst [vmem:[#allocation2 + $0x8] sm:$0xff] 0.0
    $region25: #{tpu_custom_call.1} parent=1 // pred_fallthru
      _
    %v50 = vld [vmem:[#allocation2] sm:$0xff]
    %v51 = vld [vmem:[#allocation2 + $0x8] sm:$0xff]
    %v52 = vld [vmem:[#allocation3] sm:$0xff]
    %v53 = vld [vmem:[#allocation3 + $0x8] sm:$0xff]
    %v54 = vld [vmem:[#allocation3 + $0x10] sm:$0xff]
    %v55 = vld [vmem:[#allocation3 + $0x18] sm:$0xff]
    %v56 = vld [vmem:[#allocation3 + $0x20] sm:$0xff]
    %v57 = vld [vmem:[#allocation3 + $0x28] sm:$0xff]
    %v58 = vld [vmem:[#allocation3 + $0x30] sm:$0xff]
    %v59 = vld [vmem:[#allocation3 + $0x38] sm:$0xff]
    %v60 = vld [vmem:[#allocation6] sm:$0xff]
    %v61 = vld [vmem:[#allocation6 + $0x8] sm:$0xff]
    %v62 = vld [vmem:[#allocation6 + $0x10] sm:$0xff]
    %v63 = vld [vmem:[#allocation6 + $0x18] sm:$0xff]
    %v64 = vld [vmem:[#allocation6 + $0x20] sm:$0xff]
    %v65 = vld [vmem:[#allocation6 + $0x28] sm:$0xff]
    %v66 = vld [vmem:[#allocation6 + $0x30] sm:$0xff]
    %v67 = vld [vmem:[#allocation6 + $0x38] sm:$0xff]
    %v68 = vld [vmem:[#allocation6 + $0x40] sm:$0xff]
    %v69 = vld [vmem:[#allocation6 + $0x48] sm:$0xff]
    %v70 = vld [vmem:[#allocation6 + $0x50] sm:$0xff]
    %v71 = vld [vmem:[#allocation6 + $0x58] sm:$0xff]
    %v72 = vld [vmem:[#allocation6 + $0x60] sm:$0xff]
    %v73 = vld [vmem:[#allocation6 + $0x68] sm:$0xff]
    %v74 = vld [vmem:[#allocation6 + $0x70] sm:$0xff]
    %v75 = vld [vmem:[#allocation6 + $0x78] sm:$0xff]
    %v76 = vld [vmem:[#allocation6 + $0x80] sm:$0xff]
    %v77 = vld [vmem:[#allocation6 + $0x88] sm:$0xff]
    %v78 = vld [vmem:[#allocation6 + $0x90] sm:$0xff]
    %v79 = vld [vmem:[#allocation6 + $0x98] sm:$0xff]
    %v80 = vld [vmem:[#allocation6 + $0xa0] sm:$0xff]
    %v81 = vld [vmem:[#allocation6 + $0xa8] sm:$0xff]
    %v82 = vld [vmem:[#allocation6 + $0xb0] sm:$0xff]
    %v83 = vld [vmem:[#allocation6 + $0xb8] sm:$0xff]
    %v84 = vld [vmem:[#allocation6 + $0xc0] sm:$0xff]
    %v85 = vld [vmem:[#allocation6 + $0xc8] sm:$0xff]
    %v86 = vld [vmem:[#allocation6 + $0xd0] sm:$0xff]
    %v87 = vld [vmem:[#allocation6 + $0xd8] sm:$0xff]
    %v88 = vld [vmem:[#allocation6 + $0xe0] sm:$0xff]
    %v89 = vld [vmem:[#allocation6 + $0xe8] sm:$0xff]
    %v90 = vld [vmem:[#allocation6 + $0xf0] sm:$0xff]
    %v91 = vld [vmem:[#allocation6 + $0xf8] sm:$0xff]
    %v92 = vld [vmem:[#allocation6 + $0x100] sm:$0xff]
    %v93 = vld [vmem:[#allocation6 + $0x108] sm:$0xff]
    %v94 = vld [vmem:[#allocation6 + $0x110] sm:$0xff]
    %v95 = vld [vmem:[#allocation6 + $0x118] sm:$0xff]
    %v96 = vld [vmem:[#allocation6 + $0x120] sm:$0xff]
    %v97 = vld [vmem:[#allocation6 + $0x128] sm:$0xff]
    %v98 = vld [vmem:[#allocation6 + $0x130] sm:$0xff]
    %v99 = vld [vmem:[#allocation6 + $0x138] sm:$0xff]
    %v100 = vld [vmem:[#allocation6 + $0x140] sm:$0xff]
    %v101 = vld [vmem:[#allocation6 + $0x148] sm:$0xff]
    %v102 = vld [vmem:[#allocation6 + $0x150] sm:$0xff]
    %v103 = vld [vmem:[#allocation6 + $0x158] sm:$0xff]
    %v104 = vld [vmem:[#allocation6 + $0x160] sm:$0xff]
    %v105 = vld [vmem:[#allocation6 + $0x168] sm:$0xff]
    %v106 = vld [vmem:[#allocation6 + $0x170] sm:$0xff]
    %v107 = vld [vmem:[#allocation6 + $0x178] sm:$0xff]
    %v108 = vld [vmem:[#allocation6 + $0x180] sm:$0xff]
    %v109 = vld [vmem:[#allocation6 + $0x188] sm:$0xff]
    %v110 = vld [vmem:[#allocation6 + $0x190] sm:$0xff]
    %v111 = vld [vmem:[#allocation6 + $0x198] sm:$0xff]
    %v112 = vld [vmem:[#allocation6 + $0x1a0] sm:$0xff]
    %v113 = vld [vmem:[#allocation6 + $0x1a8] sm:$0xff]
    %v114 = vld [vmem:[#allocation6 + $0x1b0] sm:$0xff]
    %v115 = vld [vmem:[#allocation6 + $0x1b8] sm:$0xff]
    %v116 = vld [vmem:[#allocation6 + $0x1c0] sm:$0xff]
    %v117 = vld [vmem:[#allocation6 + $0x1c8] sm:$0xff]
    %v118 = vld [vmem:[#allocation6 + $0x1d0] sm:$0xff]
    %v119 = vld [vmem:[#allocation6 + $0x1d8] sm:$0xff]
    %v120 = vld [vmem:[#allocation6 + $0x1e0] sm:$0xff]
    %v121 = vld [vmem:[#allocation6 + $0x1e8] sm:$0xff]
    %v122 = vld [vmem:[#allocation6 + $0x1f0] sm:$0xff]
    %v123 = vld [vmem:[#allocation6 + $0x1f8] sm:$0xff]
    %v132 = vcombine.low %v52, %v53
    %v133 = vcombine.high %v52, %v53
    %v134 = vcombine.low %v54, %v55
    %v135 = vcombine.high %v54, %v55
    %v136 = vcombine.low %v56, %v57
    %v137 = vcombine.high %v56, %v57
    %v138 = vcombine.low %v58, %v59
    %v139 = vcombine.high %v58, %v59
    %v141 = vunpack.c.l.s4 1966171168
    %v142 = vunpack.c.0.s8 %v141
    %v143 = vlaneseq
    %v144 = vshrl.u32 %v143, 7
    %v145 = vsub.s32 %v142, %v144
    %v146 = vrot.slane %v132, %v145
    %v148 = vunpack.c.l.s4 1966171168
    %v149 = vunpack.c.0.s8 %v148
    %v150 = vlaneseq
    %v151 = vshrl.u32 %v150, 7
    %v152 = vsub.s32 %v149, %v151
    %v153 = vrot.slane %v133, %v152
    %v155 = vunpack.c.l.s4 1966171168
    %v156 = vunpack.c.0.s8 %v155
    %v157 = vlaneseq
    %v158 = vshrl.u32 %v157, 7
    %v159 = vsub.s32 %v156, %v158
    %v160 = vrot.slane %v134, %v159
    %v162 = vunpack.c.l.s4 1966171168
    %v163 = vunpack.c.0.s8 %v162
    %v164 = vlaneseq
    %v165 = vshrl.u32 %v164, 7
    %v166 = vsub.s32 %v163, %v165
    %v167 = vrot.slane %v135, %v166
    %v169 = vunpack.c.l.s4 1966171168
    %v170 = vunpack.c.0.s8 %v169
    %v171 = vlaneseq
    %v172 = vshrl.u32 %v171, 7
    %v173 = vsub.s32 %v170, %v172
    %v174 = vrot.slane %v136, %v173
    %v176 = vunpack.c.l.s4 1966171168
    %v177 = vunpack.c.0.s8 %v176
    %v178 = vlaneseq
    %v179 = vshrl.u32 %v178, 7
    %v180 = vsub.s32 %v177, %v179
    %v181 = vrot.slane %v137, %v180
    %v183 = vunpack.c.l.s4 1966171168
    %v184 = vunpack.c.0.s8 %v183
    %v185 = vlaneseq
    %v186 = vshrl.u32 %v185, 7
    %v187 = vsub.s32 %v184, %v186
    %v188 = vrot.slane %v138, %v187
    %v190 = vunpack.c.l.s4 1966171168
    %v191 = vunpack.c.0.s8 %v190
    %v192 = vlaneseq
    %v193 = vshrl.u32 %v192, 7
    %v194 = vsub.s32 %v191, %v193
    %v195 = vrot.slane %v139, %v194
    %v196 = vcombine.low %v146, %v160
    %v197 = vcombine.high %v146, %v160
    %v198 = vcombine.low %v153, %v167
    %v199 = vcombine.high %v153, %v167
    %v200 = vcombine.low %v174, %v188
    %v201 = vcombine.high %v174, %v188
    %v202 = vcombine.low %v181, %v195
    %v203 = vcombine.high %v181, %v195
    %v205 = vunpack.c.l.s4 1966171168
    %v206 = vunpack.c.0.s8 %v205
    %v207 = vlaneseq
    %v208 = vshrl.u32 %v207, 7
    %v209 = vsub.s32 %v206, %v208
    %v210 = vrot.slane %v196, %v209
    %v212 = vunpack.c.l.s4 1966171168
    %v213 = vunpack.c.0.s8 %v212
    %v214 = vlaneseq
    %v215 = vshrl.u32 %v214, 7
    %v216 = vsub.s32 %v213, %v215
    %v217 = vrot.slane %v198, %v216
    %v219 = vunpack.c.l.s4 1966171168
    %v220 = vunpack.c.0.s8 %v219
    %v221 = vlaneseq
    %v222 = vshrl.u32 %v221, 7
    %v223 = vsub.s32 %v220, %v222
    %v224 = vrot.slane %v197, %v223
    %v226 = vunpack.c.l.s4 1966171168
    %v227 = vunpack.c.0.s8 %v226
    %v228 = vlaneseq
    %v229 = vshrl.u32 %v228, 7
    %v230 = vsub.s32 %v227, %v229
    %v231 = vrot.slane %v199, %v230
    %v233 = vunpack.c.l.s4 1966171168
    %v234 = vunpack.c.0.s8 %v233
    %v235 = vlaneseq
    %v236 = vshrl.u32 %v235, 7
    %v237 = vsub.s32 %v234, %v236
    %v238 = vrot.slane %v200, %v237
    %v240 = vunpack.c.l.s4 1966171168
    %v241 = vunpack.c.0.s8 %v240
    %v242 = vlaneseq
    %v243 = vshrl.u32 %v242, 7
    %v244 = vsub.s32 %v241, %v243
    %v245 = vrot.slane %v202, %v244
    %v247 = vunpack.c.l.s4 1966171168
    %v248 = vunpack.c.0.s8 %v247
    %v249 = vlaneseq
    %v250 = vshrl.u32 %v249, 7
    %v251 = vsub.s32 %v248, %v250
    %v252 = vrot.slane %v201, %v251
    %v254 = vunpack.c.l.s4 1966171168
    %v255 = vunpack.c.0.s8 %v254
    %v256 = vlaneseq
    %v257 = vshrl.u32 %v256, 7
    %v258 = vsub.s32 %v255, %v257
    %v259 = vrot.slane %v203, %v258
    %v260 = vcombine.low %v210, %v238
    %v261 = vcombine.high %v210, %v238
    %v262 = vcombine.low %v217, %v245
    %v263 = vcombine.high %v217, %v245
    %v264 = vcombine.low %v224, %v252
    %v265 = vcombine.high %v224, %v252
    %v266 = vcombine.low %v231, %v259
    %v267 = vcombine.high %v231, %v259
    %v340 = vunpack.c.l.b16 %v60
    %v341 = vunpack.c.h.b16 %v60
    %v342 = vunpack.c.l.b16 %v61
    %v343 = vunpack.c.h.b16 %v61
    %v344 = vunpack.c.l.b16 %v62
    %v345 = vunpack.c.h.b16 %v62
    %v346 = vunpack.c.l.b16 %v63
    %v347 = vunpack.c.h.b16 %v63
    %v348 = vunpack.c.l.b16 %v64
    %v349 = vunpack.c.h.b16 %v64
    %v350 = vunpack.c.l.b16 %v65
    %v351 = vunpack.c.h.b16 %v65
    %v352 = vunpack.c.l.b16 %v66
    %v353 = vunpack.c.h.b16 %v66
    %v354 = vunpack.c.l.b16 %v67
    %v355 = vunpack.c.h.b16 %v67
    %v356 = vunpack.c.l.b16 %v68
    %v357 = vunpack.c.h.b16 %v68
    %v358 = vunpack.c.l.b16 %v69
    %v359 = vunpack.c.h.b16 %v69
    %v360 = vunpack.c.l.b16 %v70
    %v361 = vunpack.c.h.b16 %v70
    %v362 = vunpack.c.l.b16 %v71
    %v363 = vunpack.c.h.b16 %v71
    %v364 = vunpack.c.l.b16 %v72
    %v365 = vunpack.c.h.b16 %v72
    %v366 = vunpack.c.l.b16 %v73
    %v367 = vunpack.c.h.b16 %v73
    %v368 = vunpack.c.l.b16 %v74
    %v369 = vunpack.c.h.b16 %v74
    %v370 = vunpack.c.l.b16 %v75
    %v371 = vunpack.c.h.b16 %v75
    %v372 = vunpack.c.l.b16 %v76
    %v373 = vunpack.c.h.b16 %v76
    %v374 = vunpack.c.l.b16 %v77
    %v375 = vunpack.c.h.b16 %v77
    %v376 = vunpack.c.l.b16 %v78
    %v377 = vunpack.c.h.b16 %v78
    %v378 = vunpack.c.l.b16 %v79
    %v379 = vunpack.c.h.b16 %v79
    %v380 = vunpack.c.l.b16 %v80
    %v381 = vunpack.c.h.b16 %v80
    %v382 = vunpack.c.l.b16 %v81
    %v383 = vunpack.c.h.b16 %v81
    %v384 = vunpack.c.l.b16 %v82
    %v385 = vunpack.c.h.b16 %v82
    %v386 = vunpack.c.l.b16 %v83
    %v387 = vunpack.c.h.b16 %v83
    %v388 = vunpack.c.l.b16 %v84
    %v389 = vunpack.c.h.b16 %v84
    %v390 = vunpack.c.l.b16 %v85
    %v391 = vunpack.c.h.b16 %v85
    %v392 = vunpack.c.l.b16 %v86
    %v393 = vunpack.c.h.b16 %v86
    %v394 = vunpack.c.l.b16 %v87
    %v395 = vunpack.c.h.b16 %v87
    %v396 = vunpack.c.l.b16 %v88
    %v397 = vunpack.c.h.b16 %v88
    %v398 = vunpack.c.l.b16 %v89
    %v399 = vunpack.c.h.b16 %v89
    %v400 = vunpack.c.l.b16 %v90
    %v401 = vunpack.c.h.b16 %v90
    %v402 = vunpack.c.l.b16 %v91
    %v403 = vunpack.c.h.b16 %v91
    %v404 = vunpack.c.l.b16 %v92
    %v405 = vunpack.c.h.b16 %v92
    %v406 = vunpack.c.l.b16 %v93
    %v407 = vunpack.c.h.b16 %v93
    %v408 = vunpack.c.l.b16 %v94
    %v409 = vunpack.c.h.b16 %v94
    %v410 = vunpack.c.l.b16 %v95
    %v411 = vunpack.c.h.b16 %v95
    %v412 = vunpack.c.l.b16 %v96
    %v413 = vunpack.c.h.b16 %v96
    %v414 = vunpack.c.l.b16 %v97
    %v415 = vunpack.c.h.b16 %v97
    %v416 = vunpack.c.l.b16 %v98
    %v417 = vunpack.c.h.b16 %v98
    %v418 = vunpack.c.l.b16 %v99
    %v419 = vunpack.c.h.b16 %v99
    %v420 = vunpack.c.l.b16 %v100
    %v421 = vunpack.c.h.b16 %v100
    %v422 = vunpack.c.l.b16 %v101
    %v423 = vunpack.c.h.b16 %v101
    %v424 = vunpack.c.l.b16 %v102
    %v425 = vunpack.c.h.b16 %v102
    %v426 = vunpack.c.l.b16 %v103
    %v427 = vunpack.c.h.b16 %v103
    %v428 = vunpack.c.l.b16 %v104
    %v429 = vunpack.c.h.b16 %v104
    %v430 = vunpack.c.l.b16 %v105
    %v431 = vunpack.c.h.b16 %v105
    %v432 = vunpack.c.l.b16 %v106
    %v433 = vunpack.c.h.b16 %v106
    %v434 = vunpack.c.l.b16 %v107
    %v435 = vunpack.c.h.b16 %v107
    %v436 = vunpack.c.l.b16 %v108
    %v437 = vunpack.c.h.b16 %v108
    %v438 = vunpack.c.l.b16 %v109
    %v439 = vunpack.c.h.b16 %v109
    %v440 = vunpack.c.l.b16 %v110
    %v441 = vunpack.c.h.b16 %v110
    %v442 = vunpack.c.l.b16 %v111
    %v443 = vunpack.c.h.b16 %v111
    %v444 = vunpack.c.l.b16 %v112
    %v445 = vunpack.c.h.b16 %v112
    %v446 = vunpack.c.l.b16 %v113
    %v447 = vunpack.c.h.b16 %v113
    %v448 = vunpack.c.l.b16 %v114
    %v449 = vunpack.c.h.b16 %v114
    %v450 = vunpack.c.l.b16 %v115
    %v451 = vunpack.c.h.b16 %v115
    %v452 = vunpack.c.l.b16 %v116
    %v453 = vunpack.c.h.b16 %v116
    %v454 = vunpack.c.l.b16 %v117
    %v455 = vunpack.c.h.b16 %v117
    %v456 = vunpack.c.l.b16 %v118
    %v457 = vunpack.c.h.b16 %v118
    %v458 = vunpack.c.l.b16 %v119
    %v459 = vunpack.c.h.b16 %v119
    %v460 = vunpack.c.l.b16 %v120
    %v461 = vunpack.c.h.b16 %v120
    %v462 = vunpack.c.l.b16 %v121
    %v463 = vunpack.c.h.b16 %v121
    %v464 = vunpack.c.l.b16 %v122
    %v465 = vunpack.c.h.b16 %v122
    %v466 = vunpack.c.l.b16 %v123
    %v467 = vunpack.c.h.b16 %v123
    %v468 = vpack.c.b16 %v348, %v340
    %v469 = vpack.c.b16 %v349, %v341
    %v470 = vpack.c.b16 %v350, %v342
    %v471 = vpack.c.b16 %v351, %v343
    %v472 = vpack.c.b16 %v352, %v344
    %v473 = vpack.c.b16 %v353, %v345
    %v474 = vpack.c.b16 %v354, %v346
    %v475 = vpack.c.b16 %v355, %v347
    %v476 = vpack.c.b16 %v364, %v356
    %v477 = vpack.c.b16 %v365, %v357
    %v478 = vpack.c.b16 %v366, %v358
    %v479 = vpack.c.b16 %v367, %v359
    %v480 = vpack.c.b16 %v368, %v360
    %v481 = vpack.c.b16 %v369, %v361
    %v482 = vpack.c.b16 %v370, %v362
    %v483 = vpack.c.b16 %v371, %v363
    %v484 = vpack.c.b16 %v380, %v372
    %v485 = vpack.c.b16 %v381, %v373
    %v486 = vpack.c.b16 %v382, %v374
    %v487 = vpack.c.b16 %v383, %v375
    %v488 = vpack.c.b16 %v384, %v376
    %v489 = vpack.c.b16 %v385, %v377
    %v490 = vpack.c.b16 %v386, %v378
    %v491 = vpack.c.b16 %v387, %v379
    %v492 = vpack.c.b16 %v396, %v388
    %v493 = vpack.c.b16 %v397, %v389
    %v494 = vpack.c.b16 %v398, %v390
    %v495 = vpack.c.b16 %v399, %v391
    %v496 = vpack.c.b16 %v400, %v392
    %v497 = vpack.c.b16 %v401, %v393
    %v498 = vpack.c.b16 %v402, %v394
    %v499 = vpack.c.b16 %v403, %v395
    %v500 = vpack.c.b16 %v412, %v404
    %v501 = vpack.c.b16 %v413, %v405
    %v502 = vpack.c.b16 %v414, %v406
    %v503 = vpack.c.b16 %v415, %v407
    %v504 = vpack.c.b16 %v416, %v408
    %v505 = vpack.c.b16 %v417, %v409
    %v506 = vpack.c.b16 %v418, %v410
    %v507 = vpack.c.b16 %v419, %v411
    %v508 = vpack.c.b16 %v428, %v420
    %v509 = vpack.c.b16 %v429, %v421
    %v510 = vpack.c.b16 %v430, %v422
    %v511 = vpack.c.b16 %v431, %v423
    %v512 = vpack.c.b16 %v432, %v424
    %v513 = vpack.c.b16 %v433, %v425
    %v514 = vpack.c.b16 %v434, %v426
    %v515 = vpack.c.b16 %v435, %v427
    %v516 = vpack.c.b16 %v444, %v436
    %v517 = vpack.c.b16 %v445, %v437
    %v518 = vpack.c.b16 %v446, %v438
    %v519 = vpack.c.b16 %v447, %v439
    %v520 = vpack.c.b16 %v448, %v440
    %v521 = vpack.c.b16 %v449, %v441
    %v522 = vpack.c.b16 %v450, %v442
    %v523 = vpack.c.b16 %v451, %v443
    %v524 = vpack.c.b16 %v460, %v452
    %v525 = vpack.c.b16 %v461, %v453
    %v526 = vpack.c.b16 %v462, %v454
    %v527 = vpack.c.b16 %v463, %v455
    %v528 = vpack.c.b16 %v464, %v456
    %v529 = vpack.c.b16 %v465, %v457
    %v530 = vpack.c.b16 %v466, %v458
    %v531 = vpack.c.b16 %v467, %v459
    %596 = vmatprep.subr.bf16.mxu0 %v469
    %597 = vmatpush1.bf16.xpose.msra.mxu0 %v468
    %598 = vmatprep.subr.bf16.mxu0 %v477
    %599 = vmatpush1.bf16.xpose.msra.mxu0 %v476
    %600 = vmatprep.subr.bf16.mxu0 %v485
    %601 = vmatpush1.bf16.xpose.msra.mxu0 %v484
    %602 = vmatprep.subr.bf16.mxu0 %v493
    %603 = vmatpush1.bf16.xpose.msra.mxu0 %v492
    %604 = vmatprep.subr.bf16.mxu0 %v501
    %605 = vmatpush1.bf16.xpose.msra.mxu0 %v500
    %606 = vmatprep.subr.bf16.mxu0 %v509
    %607 = vmatpush1.bf16.xpose.msra.mxu0 %v508
    %608 = vmatprep.subr.bf16.mxu0 %v517
    %609 = vmatpush1.bf16.xpose.msra.mxu0 %v516
    %610 = vmatprep.subr.bf16.mxu0 %v525
    %611 = vmatpush1.bf16.xpose.msra.mxu0 %v524
    %612 = vmatprep.subr.bf16.mxu0 0
    %613 = vmatpush1.bf16.xpose.msra.mxu0 0
    %614 = vmatprep.subr.bf16.mxu0 0
    %615 = vmatpush1.bf16.xpose.msra.mxu0 0
    %616 = vmatprep.subr.bf16.mxu0 0
    %617 = vmatpush1.bf16.xpose.msra.mxu0 0
    %618 = vmatprep.subr.bf16.mxu0 0
    %619 = vmatpush1.bf16.xpose.msra.mxu0 0
    %620 = vmatprep.subr.bf16.mxu0 0
    %621 = vmatpush1.bf16.xpose.msra.mxu0 0
    %622 = vmatprep.subr.bf16.mxu0 0
    %623 = vmatpush1.bf16.xpose.msra.mxu0 0
    %624 = vmatprep.subr.bf16.mxu0 0
    %625 = vmatpush1.bf16.xpose.msra.mxu0 0
    %626 = vmatprep.subr.bf16.mxu0 0
    %627 = vmatpush1.bf16.xpose.msra.mxu0 0
    %628 = vmatprep.mubr.bf16.mxu0 %v264
    %629 = vmatmul.mubr.bf16.gmra.mrb[0].mxu0 %v260
    %v630 = vpop.f32.mrb[0].mxu0
    %v631 = vadd.f32 0.0, %v630
    %v632 = vpop.f32.mrb[0].mxu0
    %v633 = vpop.f32.mrb[0].mxu0
    %v634 = vadd.f32 0.0, %v633
    %v635 = vpop.f32.mrb[0].mxu0
    %636 = vdwg.mxu0
    %637 = vmatprep.subr.bf16.mxu0 %v471
    %638 = vmatpush1.bf16.xpose.msra.mxu0 %v470
    %639 = vmatprep.subr.bf16.mxu0 %v479
    %640 = vmatpush1.bf16.xpose.msra.mxu0 %v478
    %641 = vmatprep.subr.bf16.mxu0 %v487
    %642 = vmatpush1.bf16.xpose.msra.mxu0 %v486
    %643 = vmatprep.subr.bf16.mxu0 %v495
    %644 = vmatpush1.bf16.xpose.msra.mxu0 %v494
    %645 = vmatprep.subr.bf16.mxu0 %v503
    %646 = vmatpush1.bf16.xpose.msra.mxu0 %v502
    %647 = vmatprep.subr.bf16.mxu0 %v511
    %648 = vmatpush1.bf16.xpose.msra.mxu0 %v510
    %649 = vmatprep.subr.bf16.mxu0 %v519
    %650 = vmatpush1.bf16.xpose.msra.mxu0 %v518
    %651 = vmatprep.subr.bf16.mxu0 %v527
    %652 = vmatpush1.bf16.xpose.msra.mxu0 %v526
    %653 = vmatprep.subr.bf16.mxu0 0
    %654 = vmatpush1.bf16.xpose.msra.mxu0 0
    %655 = vmatprep.subr.bf16.mxu0 0
    %656 = vmatpush1.bf16.xpose.msra.mxu0 0
    %657 = vmatprep.subr.bf16.mxu0 0
    %658 = vmatpush1.bf16.xpose.msra.mxu0 0
    %659 = vmatprep.subr.bf16.mxu0 0
    %660 = vmatpush1.bf16.xpose.msra.mxu0 0
    %661 = vmatprep.subr.bf16.mxu0 0
    %662 = vmatpush1.bf16.xpose.msra.mxu0 0
    %663 = vmatprep.subr.bf16.mxu0 0
    %664 = vmatpush1.bf16.xpose.msra.mxu0 0
    %665 = vmatprep.subr.bf16.mxu0 0
    %666 = vmatpush1.bf16.xpose.msra.mxu0 0
    %667 = vmatprep.subr.bf16.mxu0 0
    %668 = vmatpush1.bf16.xpose.msra.mxu0 0
    %669 = vmatprep.mubr.bf16.mxu0 %v265
    %670 = vmatmul.mubr.bf16.gmra.mrb[0].mxu0 %v261
    %v671 = vpop.f32.mrb[0].mxu0
    %v672 = vadd.f32 %v631, %v671
    %v673 = vpop.f32.mrb[0].mxu0
    %v674 = vpop.f32.mrb[0].mxu0
    %v675 = vadd.f32 %v634, %v674
    %v676 = vpop.f32.mrb[0].mxu0
    %677 = vdwg.mxu0
    %678 = vmatprep.subr.bf16.mxu0 %v473
    %679 = vmatpush1.bf16.xpose.msra.mxu0 %v472
    %680 = vmatprep.subr.bf16.mxu0 %v481
    %681 = vmatpush1.bf16.xpose.msra.mxu0 %v480
    %682 = vmatprep.subr.bf16.mxu0 %v489
    %683 = vmatpush1.bf16.xpose.msra.mxu0 %v488
    %684 = vmatprep.subr.bf16.mxu0 %v497
    %685 = vmatpush1.bf16.xpose.msra.mxu0 %v496
    %686 = vmatprep.subr.bf16.mxu0 %v505
    %687 = vmatpush1.bf16.xpose.msra.mxu0 %v504
    %688 = vmatprep.subr.bf16.mxu0 %v513
    %689 = vmatpush1.bf16.xpose.msra.mxu0 %v512
    %690 = vmatprep.subr.bf16.mxu0 %v521
    %691 = vmatpush1.bf16.xpose.msra.mxu0 %v520
    %692 = vmatprep.subr.bf16.mxu0 %v529
    %693 = vmatpush1.bf16.xpose.msra.mxu0 %v528
    %694 = vmatprep.subr.bf16.mxu0 0
    %695 = vmatpush1.bf16.xpose.msra.mxu0 0
    %696 = vmatprep.subr.bf16.mxu0 0
    %697 = vmatpush1.bf16.xpose.msra.mxu0 0
    %698 = vmatprep.subr.bf16.mxu0 0
    %699 = vmatpush1.bf16.xpose.msra.mxu0 0
    %700 = vmatprep.subr.bf16.mxu0 0
    %701 = vmatpush1.bf16.xpose.msra.mxu0 0
    %702 = vmatprep.subr.bf16.mxu0 0
    %703 = vmatpush1.bf16.xpose.msra.mxu0 0
    %704 = vmatprep.subr.bf16.mxu0 0
    %705 = vmatpush1.bf16.xpose.msra.mxu0 0
    %706 = vmatprep.subr.bf16.mxu0 0
    %707 = vmatpush1.bf16.xpose.msra.mxu0 0
    %708 = vmatprep.subr.bf16.mxu0 0
    %709 = vmatpush1.bf16.xpose.msra.mxu0 0
    %710 = vmatprep.mubr.bf16.mxu0 %v266
    %711 = vmatmul.mubr.bf16.gmra.mrb[0].mxu0 %v262
    %v712 = vpop.f32.mrb[0].mxu0
    %v713 = vadd.f32 %v672, %v712
    %v714 = vpop.f32.mrb[0].mxu0
    %v715 = vpop.f32.mrb[0].mxu0
    %v716 = vadd.f32 %v675, %v715
    %v717 = vpop.f32.mrb[0].mxu0
    %718 = vdwg.mxu0
    %719 = vmatprep.subr.bf16.mxu0 %v475
    %720 = vmatpush1.bf16.xpose.msra.mxu0 %v474
    %721 = vmatprep.subr.bf16.mxu0 %v483
    %722 = vmatpush1.bf16.xpose.msra.mxu0 %v482
    %723 = vmatprep.subr.bf16.mxu0 %v491
    %724 = vmatpush1.bf16.xpose.msra.mxu0 %v490
    %725 = vmatprep.subr.bf16.mxu0 %v499
    %726 = vmatpush1.bf16.xpose.msra.mxu0 %v498
    %727 = vmatprep.subr.bf16.mxu0 %v507
    %728 = vmatpush1.bf16.xpose.msra.mxu0 %v506
    %729 = vmatprep.subr.bf16.mxu0 %v515
    %730 = vmatpush1.bf16.xpose.msra.mxu0 %v514
    %731 = vmatprep.subr.bf16.mxu0 %v523
    %732 = vmatpush1.bf16.xpose.msra.mxu0 %v522
    %733 = vmatprep.subr.bf16.mxu0 %v531
    %734 = vmatpush1.bf16.xpose.msra.mxu0 %v530
    %735 = vmatprep.subr.bf16.mxu0 0
    %736 = vmatpush1.bf16.xpose.msra.mxu0 0
    %737 = vmatprep.subr.bf16.mxu0 0
    %738 = vmatpush1.bf16.xpose.msra.mxu0 0
    %739 = vmatprep.subr.bf16.mxu0 0
    %740 = vmatpush1.bf16.xpose.msra.mxu0 0
    %741 = vmatprep.subr.bf16.mxu0 0
    %742 = vmatpush1.bf16.xpose.msra.mxu0 0
    %743 = vmatprep.subr.bf16.mxu0 0
    %744 = vmatpush1.bf16.xpose.msra.mxu0 0
    %745 = vmatprep.subr.bf16.mxu0 0
    %746 = vmatpush1.bf16.xpose.msra.mxu0 0
    %747 = vmatprep.subr.bf16.mxu0 0
    %748 = vmatpush1.bf16.xpose.msra.mxu0 0
    %749 = vmatprep.subr.bf16.mxu0 0
    %750 = vmatpush1.bf16.xpose.msra.mxu0 0
    %751 = vmatprep.mubr.bf16.mxu0 %v267
    %752 = vmatmul.mubr.bf16.gmra.mrb[0].mxu0 %v263
    %v753 = vpop.f32.mrb[0].mxu0
    %v754 = vadd.f32 %v713, %v753
    %v755 = vpop.f32.mrb[0].mxu0
    %v756 = vpop.f32.mrb[0].mxu0
    %v757 = vadd.f32 %v716, %v756
    %v758 = vpop.f32.mrb[0].mxu0
    %759 = vdwg.mxu0
    %v760 = vadd.f32 %v50, %v754
    %v761 = vadd.f32 %v51, %v757
    %762 = vst [vmem:[#allocation2] sm:$0xff] %v760
    %763 = vst [vmem:[#allocation2 + $0x8] sm:$0xff] %v761
    // Predicated region
    $region26: #{tpu_custom_call.1} parent=1 // pred_check
      %p764 = pneg %p44
    $region27: #{tpu_custom_call.1} parent=1 // pred_check_branch
      %766 = sbr.rel (%p764) target = $region29
    $region28: #{tpu_custom_call.1} parent=1 // pred_region
      %v767 = vld [vmem:[#allocation2] sm:$0xff]
      %v768 = vld [vmem:[#allocation2 + $0x8] sm:$0xff]
      %v769 = vld [vmem:[%s2] sm:$0x1]
      %v771 = vlaneseq
      %v772 = vshrl.u32 %v771, 7
      %v773 = vsub.s32 0, %v772
      %v774 = vrot.slane %v769, %v773
      %v776 = vadd.f32 %v767, %v774
      %v777 = vadd.f32 %v768, %v774
      %778 = vst [vmem:[#allocation8] sm:$0xff] %v776
      %779 = vst [vmem:[#allocation8 + $0x8] sm:$0xff] %v777
    $region29: #{tpu_custom_call.1} parent=1 // pred_fallthru
      _
    // Predicated region
    $region30: #{tpu_custom_call.1} parent=1 // pred_check
      _
    $region31: #{tpu_custom_call.1} parent=1 // pred_check_branch
      %781 = sbr.rel (0) target = $region33
    $region32: #{tpu_custom_call.1} parent=1 // pred_region
      %s783 = ssub.s32 256, 32
      %784 = vsyncadd [#allocation5], %s783
      %s785 = sshll.u32 [#allocation8], 4
      %s786 = int_to_ptr.vmem [resolvable:$true] %s785
      %791 = dma.vmem_to_hbm [thread:$0]  %s786, 32, %s3, [#allocation5], 32, 32, 2
    $region33: #{tpu_custom_call.1} parent=1 // pred_fallthru
      _
    // Predicated region
    $region34: #{tpu_custom_call.1} parent=1 // pred_check
      _
    $region35: #{tpu_custom_call.1} parent=1 // pred_check_branch
      %793 = sbr.rel (0) target = $region37
    $region36: #{tpu_custom_call.1} parent=1 // pred_region
      %794 = dma.done [#allocation5], 256
    $region37: #{tpu_custom_call.1} parent=1 // pred_fallthru
      _
    %795 = vsyncpa [#allocation4], 1
    %796 = vsyncpa [#allocation7], 1
    %797 = vsyncpa [#allocation5], 1

// kernel: tpu_custom_call.1
$region0: #{tpu_custom_call.1}
  #allocation0 [shape = 'u32[]', space=smem, size = 0x4, offset = 0x4, fixed_abs, tag = 'smem constant byte address 0x4 - core index']
  #allocation1 [shape = 'u32[144,128]{1,0:T(1,128)}', space=vmem, size = 0x12000, scoped, tag = 'internal scratch']
  #allocation2 [shape = 'f32[16,128]{1,0:T(8,128)}', space=vmem, size = 0x2000, scoped, tag = 'scratch operand']
  %s0 = inlined_call_operand.hbm [shape: bf16[2,1024], index: 0, kind: input, shape index: {}]
  %s1 = inlined_call_operand.hbm [shape: bf16[128,1024], index: 1, kind: input, shape index: {}]
  %s2 = inlined_call_operand.vmem [shape: f32[1,128], index: 2, kind: input, shape index: {}]
  %s3 = inlined_call_operand.hbm [shape: f32[2,128], index: 3, kind: output, shape index: {}]
  %s4 = sld [smem:[#allocation0]]
  $region38: #{tpu_custom_call.1} parent=0
    _
  %s6 = ssub.s32 1, %s4
  %s7 = scalar_select 0, %s6, %s4
  $region1: #{tpu_custom_call.1} parent=0
    #allocation3 [shape = 'u8[32768]{0}', space=vmem, size = 0x8000, scoped, tag = 'input window, operand 0, single buffered']
    #allocation4 [shape = 's32[1]{0}', space=sflag, size = 0x4, scoped, tag = 'scoped memory for tpu_custom_call.1']
    #allocation5 [shape = 's32[1]{0}', space=sflag, size = 0x4, scoped, tag = 'scoped memory for tpu_custom_call.1']
    #allocation6 [shape = 'u8[262144]{0}', space=vmem, size = 0x40000, scoped, tag = 'input window, operand 1, single buffered']
    #allocation7 [shape = 's32[1]{0}', space=sflag, size = 0x4, scoped, tag = 'scoped memory for tpu_custom_call.1']
    #allocation8 [shape = 'u8[8192]{0}', space=vmem, size = 0x2000, scoped, tag = 'output window, operand 0, single buffered']
    %8 = vsyncpa [#allocation4], 0
    %9 = vsyncpa [#allocation7], 0
    %10 = vsyncpa [#allocation5], 0
    // Predicated region
    $region2: #{tpu_custom_call.1} parent=1 // pred_check
      _
    $region3: #{tpu_custom_call.1} parent=1 // pred_check_branch
      %12 = sbr.rel (0) target = $region5
    $region4: #{tpu_custom_call.1} parent=1 // pred_region
      %s14 = ssub.s32 1024, 128
      %15 = vsyncadd [#allocation4], %s14
      %s16 = sshll.u32 [#allocation3], 4
      %s17 = int_to_ptr.vmem [resolvable:$true] %s16
      %22 = dma.hbm_to_vmem [thread:$0]  %s0, 128, %s17, [#allocation4], 128, 128, 8
    $region5: #{tpu_custom_call.1} parent=1 // pred_fallthru
      _
    // Predicated region
    $region6: #{tpu_custom_call.1} parent=1 // pred_check
      _
    $region7: #{tpu_custom_call.1} parent=1 // pred_check_branch
      %24 = sbr.rel (0) target = $region9
    $region8: #{tpu_custom_call.1} parent=1 // pred_region
      %s26 = ssub.s32 8192, 8192
      %27 = vsyncadd [#allocation7], %s26
      %s28 = sshll.u32 [#allocation6], 4
      %s29 = int_to_ptr.vmem [resolvable:$true] %s28
      %34 = dma.hbm_to_vmem [thread:$0]  %s1, 8192, %s29, [#allocation7], 512, 512, 32
    $region9: #{tpu_custom_call.1} parent=1 // pred_fallthru
      _
    // Predicated region
    $region10: #{tpu_custom_call.1} parent=1 // pred_check
      _
    $region11: #{tpu_custom_call.1} parent=1 // pred_check_branch
      %36 = sbr.rel (0) target = $region13
    $region12: #{tpu_custom_call.1} parent=1 // pred_region
      _
    $region13: #{tpu_custom_call.1} parent=1 // pred_fallthru
      _
    // Predicated region
    $region14: #{tpu_custom_call.1} parent=1 // pred_check
      _
    $region15: #{tpu_custom_call.1} parent=1 // pred_check_branch
      %38 = sbr.rel (0) target = $region17
    $region16: #{tpu_custom_call.1} parent=1 // pred_region
      %39 = dma.done [#allocation4], 1024
    $region17: #{tpu_custom_call.1} parent=1 // pred_fallthru
      _
    // Predicated region
    $region18: #{tpu_custom_call.1} parent=1 // pred_check
      _
    $region19: #{tpu_custom_call.1} parent=1 // pred_check_branch
      %41 = sbr.rel (0) target = $region21
    $region20: #{tpu_custom_call.1} parent=1 // pred_region
      %42 = dma.done [#allocation7], 8192
    $region21: #{tpu_custom_call.1} parent=1 // pred_fallthru
      _
    %p44 = scmp.eq.s32.totalorder 0, 0
    // Predicated region
    $region22: #{tpu_custom_call.1} parent=1 // pred_check
      %p45 = pneg %p44
    $region23: #{tpu_custom_call.1} parent=1 // pred_check_branch
      %47 = sbr.rel (%p45) target = $region25
    $region24: #{tpu_custom_call.1} parent=1 // pred_region
      %48 = vst [vmem:[#allocation2] sm:$0xff] 0.0
      %49 = vst [vmem:[#allocation2 + $0x8] sm:$0xff] 0.0
    $region25: #{tpu_custom_call.1} parent=1 // pred_fallthru
      _
    %v50 = vld [vmem:[#allocation2] sm:$0xff]
    %v51 = vld [vmem:[#allocation2 + $0x8] sm:$0xff]
    %v52 = vld [vmem:[#allocation3] sm:$0xff]
    %v53 = vld [vmem:[#allocation3 + $0x8] sm:$0xff]
    %v54 = vld [vmem:[#allocation3 + $0x10] sm:$0xff]
    %v55 = vld [vmem:[#allocation3 + $0x18] sm:$0xff]
    %v56 = vld [vmem:[#allocation3 + $0x20] sm:$0xff]
    %v57 = vld [vmem:[#allocation3 + $0x28] sm:$0xff]
    %v58 = vld [vmem:[#allocation3 + $0x30] sm:$0xff]
    %v59 = vld [vmem:[#allocation3 + $0x38] sm:$0xff]
    %v60 = vld [vmem:[#allocation6] sm:$0xff]
    %v61 = vld [vmem:[#allocation6 + $0x8] sm:$0xff]
    %v62 = vld [vmem:[#allocation6 + $0x10] sm:$0xff]
    %v63 = vld [vmem:[#allocation6 + $0x18] sm:$0xff]
    %v64 = vld [vmem:[#allocation6 + $0x20] sm:$0xff]
    %v65 = vld [vmem:[#allocation6 + $0x28] sm:$0xff]
    %v66 = vld [vmem:[#allocation6 + $0x30] sm:$0xff]
    %v67 = vld [vmem:[#allocation6 + $0x38] sm:$0xff]
    %v68 = vld [vmem:[#allocation6 + $0x40] sm:$0xff]
    %v69 = vld [vmem:[#allocation6 + $0x48] sm:$0xff]
    %v70 = vld [vmem:[#allocation6 + $0x50] sm:$0xff]
    %v71 = vld [vmem:[#allocation6 + $0x58] sm:$0xff]
    %v72 = vld [vmem:[#allocation6 + $0x60] sm:$0xff]
    %v73 = vld [vmem:[#allocation6 + $0x68] sm:$0xff]
    %v74 = vld [vmem:[#allocation6 + $0x70] sm:$0xff]
    %v75 = vld [vmem:[#allocation6 + $0x78] sm:$0xff]
    %v76 = vld [vmem:[#allocation6 + $0x80] sm:$0xff]
    %v77 = vld [vmem:[#allocation6 + $0x88] sm:$0xff]
    %v78 = vld [vmem:[#allocation6 + $0x90] sm:$0xff]
    %v79 = vld [vmem:[#allocation6 + $0x98] sm:$0xff]
    %v80 = vld [vmem:[#allocation6 + $0xa0] sm:$0xff]
    %v81 = vld [vmem:[#allocation6 + $0xa8] sm:$0xff]
    %v82 = vld [vmem:[#allocation6 + $0xb0] sm:$0xff]
    %v83 = vld [vmem:[#allocation6 + $0xb8] sm:$0xff]
    %v84 = vld [vmem:[#allocation6 + $0xc0] sm:$0xff]
    %v85 = vld [vmem:[#allocation6 + $0xc8] sm:$0xff]
    %v86 = vld [vmem:[#allocation6 + $0xd0] sm:$0xff]
    %v87 = vld [vmem:[#allocation6 + $0xd8] sm:$0xff]
    %v88 = vld [vmem:[#allocation6 + $0xe0] sm:$0xff]
    %v89 = vld [vmem:[#allocation6 + $0xe8] sm:$0xff]
    %v90 = vld [vmem:[#allocation6 + $0xf0] sm:$0xff]
    %v91 = vld [vmem:[#allocation6 + $0xf8] sm:$0xff]
    %v92 = vld [vmem:[#allocation6 + $0x100] sm:$0xff]
    %v93 = vld [vmem:[#allocation6 + $0x108] sm:$0xff]
    %v94 = vld [vmem:[#allocation6 + $0x110] sm:$0xff]
    %v95 = vld [vmem:[#allocation6 + $0x118] sm:$0xff]
    %v96 = vld [vmem:[#allocation6 + $0x120] sm:$0xff]
    %v97 = vld [vmem:[#allocation6 + $0x128] sm:$0xff]
    %v98 = vld [vmem:[#allocation6 + $0x130] sm:$0xff]
    %v99 = vld [vmem:[#allocation6 + $0x138] sm:$0xff]
    %v100 = vld [vmem:[#allocation6 + $0x140] sm:$0xff]
    %v101 = vld [vmem:[#allocation6 + $0x148] sm:$0xff]
    %v102 = vld [vmem:[#allocation6 + $0x150] sm:$0xff]
    %v103 = vld [vmem:[#allocation6 + $0x158] sm:$0xff]
    %v104 = vld [vmem:[#allocation6 + $0x160] sm:$0xff]
    %v105 = vld [vmem:[#allocation6 + $0x168] sm:$0xff]
    %v106 = vld [vmem:[#allocation6 + $0x170] sm:$0xff]
    %v107 = vld [vmem:[#allocation6 + $0x178] sm:$0xff]
    %v108 = vld [vmem:[#allocation6 + $0x180] sm:$0xff]
    %v109 = vld [vmem:[#allocation6 + $0x188] sm:$0xff]
    %v110 = vld [vmem:[#allocation6 + $0x190] sm:$0xff]
    %v111 = vld [vmem:[#allocation6 + $0x198] sm:$0xff]
    %v112 = vld [vmem:[#allocation6 + $0x1a0] sm:$0xff]
    %v113 = vld [vmem:[#allocation6 + $0x1a8] sm:$0xff]
    %v114 = vld [vmem:[#allocation6 + $0x1b0] sm:$0xff]
    %v115 = vld [vmem:[#allocation6 + $0x1b8] sm:$0xff]
    %v116 = vld [vmem:[#allocation6 + $0x1c0] sm:$0xff]
    %v117 = vld [vmem:[#allocation6 + $0x1c8] sm:$0xff]
    %v118 = vld [vmem:[#allocation6 + $0x1d0] sm:$0xff]
    %v119 = vld [vmem:[#allocation6 + $0x1d8] sm:$0xff]
    %v120 = vld [vmem:[#allocation6 + $0x1e0] sm:$0xff]
    %v121 = vld [vmem:[#allocation6 + $0x1e8] sm:$0xff]
    %v122 = vld [vmem:[#allocation6 + $0x1f0] sm:$0xff]
    %v123 = vld [vmem:[#allocation6 + $0x1f8] sm:$0xff]
    %v132 = vcombine.low %v52, %v53
    %v133 = vcombine.high %v52, %v53
    %v134 = vcombine.low %v54, %v55
    %v135 = vcombine.high %v54, %v55
    %v136 = vcombine.low %v56, %v57
    %v137 = vcombine.high %v56, %v57
    %v138 = vcombine.low %v58, %v59
    %v139 = vcombine.high %v58, %v59
    %v141 = vunpack.c.l.s4 1966171168
    %v142 = vunpack.c.0.s8 %v141
    %v143 = vlaneseq
    %v144 = vshrl.u32 %v143, 7
    %v145 = vsub.s32 %v142, %v144
    %v146 = vrot.slane %v132, %v145
    %v148 = vunpack.c.l.s4 1966171168
    %v149 = vunpack.c.0.s8 %v148
    %v150 = vlaneseq
    %v151 = vshrl.u32 %v150, 7
    %v152 = vsub.s32 %v149, %v151
    %v153 = vrot.slane %v133, %v152
    %v155 = vunpack.c.l.s4 1966171168
    %v156 = vunpack.c.0.s8 %v155
    %v157 = vlaneseq
    %v158 = vshrl.u32 %v157, 7
    %v159 = vsub.s32 %v156, %v158
    %v160 = vrot.slane %v134, %v159
    %v162 = vunpack.c.l.s4 1966171168
    %v163 = vunpack.c.0.s8 %v162
    %v164 = vlaneseq
    %v165 = vshrl.u32 %v164, 7
    %v166 = vsub.s32 %v163, %v165
    %v167 = vrot.slane %v135, %v166
    %v169 = vunpack.c.l.s4 1966171168
    %v170 = vunpack.c.0.s8 %v169
    %v171 = vlaneseq
    %v172 = vshrl.u32 %v171, 7
    %v173 = vsub.s32 %v170, %v172
    %v174 = vrot.slane %v136, %v173
    %v176 = vunpack.c.l.s4 1966171168
    %v177 = vunpack.c.0.s8 %v176
    %v178 = vlaneseq
    %v179 = vshrl.u32 %v178, 7
    %v180 = vsub.s32 %v177, %v179
    %v181 = vrot.slane %v137, %v180
    %v183 = vunpack.c.l.s4 1966171168
    %v184 = vunpack.c.0.s8 %v183
    %v185 = vlaneseq
    %v186 = vshrl.u32 %v185, 7
    %v187 = vsub.s32 %v184, %v186
    %v188 = vrot.slane %v138, %v187
    %v190 = vunpack.c.l.s4 1966171168
    %v191 = vunpack.c.0.s8 %v190
    %v192 = vlaneseq
    %v193 = vshrl.u32 %v192, 7
    %v194 = vsub.s32 %v191, %v193
    %v195 = vrot.slane %v139, %v194
    %v196 = vcombine.low %v146, %v160
    %v197 = vcombine.high %v146, %v160
    %v198 = vcombine.low %v153, %v167
    %v199 = vcombine.high %v153, %v167
    %v200 = vcombine.low %v174, %v188
    %v201 = vcombine.high %v174, %v188
    %v202 = vcombine.low %v181, %v195
    %v203 = vcombine.high %v181, %v195
    %v205 = vunpack.c.l.s4 1966171168
    %v206 = vunpack.c.0.s8 %v205
    %v207 = vlaneseq
    %v208 = vshrl.u32 %v207, 7
    %v209 = vsub.s32 %v206, %v208
    %v210 = vrot.slane %v196, %v209
    %v212 = vunpack.c.l.s4 1966171168
    %v213 = vunpack.c.0.s8 %v212
    %v214 = vlaneseq
    %v215 = vshrl.u32 %v214, 7
    %v216 = vsub.s32 %v213, %v215
    %v217 = vrot.slane %v198, %v216
    %v219 = vunpack.c.l.s4 1966171168
    %v220 = vunpack.c.0.s8 %v219
    %v221 = vlaneseq
    %v222 = vshrl.u32 %v221, 7
    %v223 = vsub.s32 %v220, %v222
    %v224 = vrot.slane %v197, %v223
    %v226 = vunpack.c.l.s4 1966171168
    %v227 = vunpack.c.0.s8 %v226
    %v228 = vlaneseq
    %v229 = vshrl.u32 %v228, 7
    %v230 = vsub.s32 %v227, %v229
    %v231 = vrot.slane %v199, %v230
    %v233 = vunpack.c.l.s4 1966171168
    %v234 = vunpack.c.0.s8 %v233
    %v235 = vlaneseq
    %v236 = vshrl.u32 %v235, 7
    %v237 = vsub.s32 %v234, %v236
    %v238 = vrot.slane %v200, %v237
    %v240 = vunpack.c.l.s4 1966171168
    %v241 = vunpack.c.0.s8 %v240
    %v242 = vlaneseq
    %v243 = vshrl.u32 %v242, 7
    %v244 = vsub.s32 %v241, %v243
    %v245 = vrot.slane %v202, %v244
    %v247 = vunpack.c.l.s4 1966171168
    %v248 = vunpack.c.0.s8 %v247
    %v249 = vlaneseq
    %v250 = vshrl.u32 %v249, 7
    %v251 = vsub.s32 %v248, %v250
    %v252 = vrot.slane %v201, %v251
    %v254 = vunpack.c.l.s4 1966171168
    %v255 = vunpack.c.0.s8 %v254
    %v256 = vlaneseq
    %v257 = vshrl.u32 %v256, 7
    %v258 = vsub.s32 %v255, %v257
    %v259 = vrot.slane %v203, %v258
    %v260 = vcombine.low %v210, %v238
    %v261 = vcombine.high %v210, %v238
    %v262 = vcombine.low %v217, %v245
    %v263 = vcombine.high %v217, %v245
    %v264 = vcombine.low %v224, %v252
    %v265 = vcombine.high %v224, %v252
    %v266 = vcombine.low %v231, %v259
    %v267 = vcombine.high %v231, %v259
    %v340 = vunpack.c.l.b16 %v60
    %v341 = vunpack.c.h.b16 %v60
    %v342 = vunpack.c.l.b16 %v61
    %v343 = vunpack.c.h.b16 %v61
    %v344 = vunpack.c.l.b16 %v62
    %v345 = vunpack.c.h.b16 %v62
    %v346 = vunpack.c.l.b16 %v63
    %v347 = vunpack.c.h.b16 %v63
    %v348 = vunpack.c.l.b16 %v64
    %v349 = vunpack.c.h.b16 %v64
    %v350 = vunpack.c.l.b16 %v65
    %v351 = vunpack.c.h.b16 %v65
    %v352 = vunpack.c.l.b16 %v66
    %v353 = vunpack.c.h.b16 %v66
    %v354 = vunpack.c.l.b16 %v67
    %v355 = vunpack.c.h.b16 %v67
    %v356 = vunpack.c.l.b16 %v68
    %v357 = vunpack.c.h.b16 %v68
    %v358 = vunpack.c.l.b16 %v69
    %v359 = vunpack.c.h.b16 %v69
    %v360 = vunpack.c.l.b16 %v70
    %v361 = vunpack.c.h.b16 %v70
    %v362 = vunpack.c.l.b16 %v71
    %v363 = vunpack.c.h.b16 %v71
    %v364 = vunpack.c.l.b16 %v72
    %v365 = vunpack.c.h.b16 %v72
    %v366 = vunpack.c.l.b16 %v73
    %v367 = vunpack.c.h.b16 %v73
    %v368 = vunpack.c.l.b16 %v74
    %v369 = vunpack.c.h.b16 %v74
    %v370 = vunpack.c.l.b16 %v75
    %v371 = vunpack.c.h.b16 %v75
    %v372 = vunpack.c.l.b16 %v76
    %v373 = vunpack.c.h.b16 %v76
    %v374 = vunpack.c.l.b16 %v77
    %v375 = vunpack.c.h.b16 %v77
    %v376 = vunpack.c.l.b16 %v78
    %v377 = vunpack.c.h.b16 %v78
    %v378 = vunpack.c.l.b16 %v79
    %v379 = vunpack.c.h.b16 %v79
    %v380 = vunpack.c.l.b16 %v80
    %v381 = vunpack.c.h.b16 %v80
    %v382 = vunpack.c.l.b16 %v81
    %v383 = vunpack.c.h.b16 %v81
    %v384 = vunpack.c.l.b16 %v82
    %v385 = vunpack.c.h.b16 %v82
    %v386 = vunpack.c.l.b16 %v83
    %v387 = vunpack.c.h.b16 %v83
    %v388 = vunpack.c.l.b16 %v84
    %v389 = vunpack.c.h.b16 %v84
    %v390 = vunpack.c.l.b16 %v85
    %v391 = vunpack.c.h.b16 %v85
    %v392 = vunpack.c.l.b16 %v86
    %v393 = vunpack.c.h.b16 %v86
    %v394 = vunpack.c.l.b16 %v87
    %v395 = vunpack.c.h.b16 %v87
    %v396 = vunpack.c.l.b16 %v88
    %v397 = vunpack.c.h.b16 %v88
    %v398 = vunpack.c.l.b16 %v89
    %v399 = vunpack.c.h.b16 %v89
    %v400 = vunpack.c.l.b16 %v90
    %v401 = vunpack.c.h.b16 %v90
    %v402 = vunpack.c.l.b16 %v91
    %v403 = vunpack.c.h.b16 %v91
    %v404 = vunpack.c.l.b16 %v92
    %v405 = vunpack.c.h.b16 %v92
    %v406 = vunpack.c.l.b16 %v93
    %v407 = vunpack.c.h.b16 %v93
    %v408 = vunpack.c.l.b16 %v94
    %v409 = vunpack.c.h.b16 %v94
    %v410 = vunpack.c.l.b16 %v95
    %v411 = vunpack.c.h.b16 %v95
    %v412 = vunpack.c.l.b16 %v96
    %v413 = vunpack.c.h.b16 %v96
    %v414 = vunpack.c.l.b16 %v97
    %v415 = vunpack.c.h.b16 %v97
    %v416 = vunpack.c.l.b16 %v98
    %v417 = vunpack.c.h.b16 %v98
    %v418 = vunpack.c.l.b16 %v99
    %v419 = vunpack.c.h.b16 %v99
    %v420 = vunpack.c.l.b16 %v100
    %v421 = vunpack.c.h.b16 %v100
    %v422 = vunpack.c.l.b16 %v101
    %v423 = vunpack.c.h.b16 %v101
    %v424 = vunpack.c.l.b16 %v102
    %v425 = vunpack.c.h.b16 %v102
    %v426 = vunpack.c.l.b16 %v103
    %v427 = vunpack.c.h.b16 %v103
    %v428 = vunpack.c.l.b16 %v104
    %v429 = vunpack.c.h.b16 %v104
    %v430 = vunpack.c.l.b16 %v105
    %v431 = vunpack.c.h.b16 %v105
    %v432 = vunpack.c.l.b16 %v106
    %v433 = vunpack.c.h.b16 %v106
    %v434 = vunpack.c.l.b16 %v107
    %v435 = vunpack.c.h.b16 %v107
    %v436 = vunpack.c.l.b16 %v108
    %v437 = vunpack.c.h.b16 %v108
    %v438 = vunpack.c.l.b16 %v109
    %v439 = vunpack.c.h.b16 %v109
    %v440 = vunpack.c.l.b16 %v110
    %v441 = vunpack.c.h.b16 %v110
    %v442 = vunpack.c.l.b16 %v111
    %v443 = vunpack.c.h.b16 %v111
    %v444 = vunpack.c.l.b16 %v112
    %v445 = vunpack.c.h.b16 %v112
    %v446 = vunpack.c.l.b16 %v113
    %v447 = vunpack.c.h.b16 %v113
    %v448 = vunpack.c.l.b16 %v114
    %v449 = vunpack.c.h.b16 %v114
    %v450 = vunpack.c.l.b16 %v115
    %v451 = vunpack.c.h.b16 %v115
    %v452 = vunpack.c.l.b16 %v116
    %v453 = vunpack.c.h.b16 %v116
    %v454 = vunpack.c.l.b16 %v117
    %v455 = vunpack.c.h.b16 %v117
    %v456 = vunpack.c.l.b16 %v118
    %v457 = vunpack.c.h.b16 %v118
    %v458 = vunpack.c.l.b16 %v119
    %v459 = vunpack.c.h.b16 %v119
    %v460 = vunpack.c.l.b16 %v120
    %v461 = vunpack.c.h.b16 %v120
    %v462 = vunpack.c.l.b16 %v121
    %v463 = vunpack.c.h.b16 %v121
    %v464 = vunpack.c.l.b16 %v122
    %v465 = vunpack.c.h.b16 %v122
    %v466 = vunpack.c.l.b16 %v123
    %v467 = vunpack.c.h.b16 %v123
    %v468 = vpack.c.b16 %v348, %v340
    %v469 = vpack.c.b16 %v349, %v341
    %v470 = vpack.c.b16 %v350, %v342
    %v471 = vpack.c.b16 %v351, %v343
    %v472 = vpack.c.b16 %v352, %v344
    %v473 = vpack.c.b16 %v353, %v345
    %v474 = vpack.c.b16 %v354, %v346
    %v475 = vpack.c.b16 %v355, %v347
    %v476 = vpack.c.b16 %v364, %v356
    %v477 = vpack.c.b16 %v365, %v357
    %v478 = vpack.c.b16 %v366, %v358
    %v479 = vpack.c.b16 %v367, %v359
    %v480 = vpack.c.b16 %v368, %v360
    %v481 = vpack.c.b16 %v369, %v361
    %v482 = vpack.c.b16 %v370, %v362
    %v483 = vpack.c.b16 %v371, %v363
    %v484 = vpack.c.b16 %v380, %v372
    %v485 = vpack.c.b16 %v381, %v373
    %v486 = vpack.c.b16 %v382, %v374
    %v487 = vpack.c.b16 %v383, %v375
    %v488 = vpack.c.b16 %v384, %v376
    %v489 = vpack.c.b16 %v385, %v377
    %v490 = vpack.c.b16 %v386, %v378
    %v491 = vpack.c.b16 %v387, %v379
    %v492 = vpack.c.b16 %v396, %v388
    %v493 = vpack.c.b16 %v397, %v389
    %v494 = vpack.c.b16 %v398, %v390
    %v495 = vpack.c.b16 %v399, %v391
    %v496 = vpack.c.b16 %v400, %v392
    %v497 = vpack.c.b16 %v401, %v393
    %v498 = vpack.c.b16 %v402, %v394
    %v499 = vpack.c.b16 %v403, %v395
    %v500 = vpack.c.b16 %v412, %v404
    %v501 = vpack.c.b16 %v413, %v405
    %v502 = vpack.c.b16 %v414, %v406
    %v503 = vpack.c.b16 %v415, %v407
    %v504 = vpack.c.b16 %v416, %v408
    %v505 = vpack.c.b16 %v417, %v409
    %v506 = vpack.c.b16 %v418, %v410
    %v507 = vpack.c.b16 %v419, %v411
    %v508 = vpack.c.b16 %v428, %v420
    %v509 = vpack.c.b16 %v429, %v421
    %v510 = vpack.c.b16 %v430, %v422
    %v511 = vpack.c.b16 %v431, %v423
    %v512 = vpack.c.b16 %v432, %v424
    %v513 = vpack.c.b16 %v433, %v425
    %v514 = vpack.c.b16 %v434, %v426
    %v515 = vpack.c.b16 %v435, %v427
    %v516 = vpack.c.b16 %v444, %v436
    %v517 = vpack.c.b16 %v445, %v437
    %v518 = vpack.c.b16 %v446, %v438
    %v519 = vpack.c.b16 %v447, %v439
    %v520 = vpack.c.b16 %v448, %v440
    %v521 = vpack.c.b16 %v449, %v441
    %v522 = vpack.c.b16 %v450, %v442
    %v523 = vpack.c.b16 %v451, %v443
    %v524 = vpack.c.b16 %v460, %v452
    %v525 = vpack.c.b16 %v461, %v453
    %v526 = vpack.c.b16 %v462, %v454
    %v527 = vpack.c.b16 %v463, %v455
    %v528 = vpack.c.b16 %v464, %v456
    %v529 = vpack.c.b16 %v465, %v457
    %v530 = vpack.c.b16 %v466, %v458
    %v531 = vpack.c.b16 %v467, %v459
    %596 = vmatprep.subr.bf16.mxu0 %v469
    %597 = vmatpush1.bf16.xpose.msra.mxu0 %v468
    %598 = vmatprep.subr.bf16.mxu0 %v477
    %599 = vmatpush1.bf16.xpose.msra.mxu0 %v476
    %600 = vmatprep.subr.bf16.mxu0 %v485
    %601 = vmatpush1.bf16.xpose.msra.mxu0 %v484
    %602 = vmatprep.subr.bf16.mxu0 %v493
    %603 = vmatpush1.bf16.xpose.msra.mxu0 %v492
    %604 = vmatprep.subr.bf16.mxu0 %v501
    %605 = vmatpush1.bf16.xpose.msra.mxu0 %v500
    %606 = vmatprep.subr.bf16.mxu0 %v509
    %607 = vmatpush1.bf16.xpose.msra.mxu0 %v508
    %608 = vmatprep.subr.bf16.mxu0 %v517
    %609 = vmatpush1.bf16.xpose.msra.mxu0 %v516
    %610 = vmatprep.subr.bf16.mxu0 %v525
    %611 = vmatpush1.bf16.xpose.msra.mxu0 %v524
    %612 = vmatprep.subr.bf16.mxu0 0
    %613 = vmatpush1.bf16.xpose.msra.mxu0 0
    %614 = vmatprep.subr.bf16.mxu0 0
    %615 = vmatpush1.bf16.xpose.msra.mxu0 0
    %616 = vmatprep.subr.bf16.mxu0 0
    %617 = vmatpush1.bf16.xpose.msra.mxu0 0
    %618 = vmatprep.subr.bf16.mxu0 0
    %619 = vmatpush1.bf16.xpose.msra.mxu0 0
    %620 = vmatprep.subr.bf16.mxu0 0
    %621 = vmatpush1.bf16.xpose.msra.mxu0 0
    %622 = vmatprep.subr.bf16.mxu0 0
    %623 = vmatpush1.bf16.xpose.msra.mxu0 0
    %624 = vmatprep.subr.bf16.mxu0 0
    %625 = vmatpush1.bf16.xpose.msra.mxu0 0
    %626 = vmatprep.subr.bf16.mxu0 0
    %627 = vmatpush1.bf16.xpose.msra.mxu0 0
    %628 = vmatprep.mubr.bf16.mxu0 %v264
    %629 = vmatmul.mubr.bf16.gmra.mrb[0].mxu0 %v260
    %v630 = vpop.f32.mrb[0].mxu0
    %v631 = vadd.f32 0.0, %v630
    %v632 = vpop.f32.mrb[0].mxu0
    %v633 = vpop.f32.mrb[0].mxu0
    %v634 = vadd.f32 0.0, %v633
    %v635 = vpop.f32.mrb[0].mxu0
    %636 = vdwg.mxu0
    %637 = vmatprep.subr.bf16.mxu0 %v471
    %638 = vmatpush1.bf16.xpose.msra.mxu0 %v470
    %639 = vmatprep.subr.bf16.mxu0 %v479
    %640 = vmatpush1.bf16.xpose.msra.mxu0 %v478
    %641 = vmatprep.subr.bf16.mxu0 %v487
    %642 = vmatpush1.bf16.xpose.msra.mxu0 %v486
    %643 = vmatprep.subr.bf16.mxu0 %v495
    %644 = vmatpush1.bf16.xpose.msra.mxu0 %v494
    %645 = vmatprep.subr.bf16.mxu0 %v503
    %646 = vmatpush1.bf16.xpose.msra.mxu0 %v502
    %647 = vmatprep.subr.bf16.mxu0 %v511
    %648 = vmatpush1.bf16.xpose.msra.mxu0 %v510
    %649 = vmatprep.subr.bf16.mxu0 %v519
    %650 = vmatpush1.bf16.xpose.msra.mxu0 %v518
    %651 = vmatprep.subr.bf16.mxu0 %v527
    %652 = vmatpush1.bf16.xpose.msra.mxu0 %v526
    %653 = vmatprep.subr.bf16.mxu0 0
    %654 = vmatpush1.bf16.xpose.msra.mxu0 0
    %655 = vmatprep.subr.bf16.mxu0 0
    %656 = vmatpush1.bf16.xpose.msra.mxu0 0
    %657 = vmatprep.subr.bf16.mxu0 0
    %658 = vmatpush1.bf16.xpose.msra.mxu0 0
    %659 = vmatprep.subr.bf16.mxu0 0
    %660 = vmatpush1.bf16.xpose.msra.mxu0 0
    %661 = vmatprep.subr.bf16.mxu0 0
    %662 = vmatpush1.bf16.xpose.msra.mxu0 0
    %663 = vmatprep.subr.bf16.mxu0 0
    %664 = vmatpush1.bf16.xpose.msra.mxu0 0
    %665 = vmatprep.subr.bf16.mxu0 0
    %666 = vmatpush1.bf16.xpose.msra.mxu0 0
    %667 = vmatprep.subr.bf16.mxu0 0
    %668 = vmatpush1.bf16.xpose.msra.mxu0 0
    %669 = vmatprep.mubr.bf16.mxu0 %v265
    %670 = vmatmul.mubr.bf16.gmra.mrb[0].mxu0 %v261
    %v671 = vpop.f32.mrb[0].mxu0
    %v672 = vadd.f32 %v631, %v671
    %v673 = vpop.f32.mrb[0].mxu0
    %v674 = vpop.f32.mrb[0].mxu0
    %v675 = vadd.f32 %v634, %v674
    %v676 = vpop.f32.mrb[0].mxu0
    %677 = vdwg.mxu0
    %678 = vmatprep.subr.bf16.mxu0 %v473
    %679 = vmatpush1.bf16.xpose.msra.mxu0 %v472
    %680 = vmatprep.subr.bf16.mxu0 %v481
    %681 = vmatpush1.bf16.xpose.msra.mxu0 %v480
    %682 = vmatprep.subr.bf16.mxu0 %v489
    %683 = vmatpush1.bf16.xpose.msra.mxu0 %v488
    %684 = vmatprep.subr.bf16.mxu0 %v497
    %685 = vmatpush1.bf16.xpose.msra.mxu0 %v496
    %686 = vmatprep.subr.bf16.mxu0 %v505
    %687 = vmatpush1.bf16.xpose.msra.mxu0 %v504
    %688 = vmatprep.subr.bf16.mxu0 %v513
    %689 = vmatpush1.bf16.xpose.msra.mxu0 %v512
    %690 = vmatprep.subr.bf16.mxu0 %v521
    %691 = vmatpush1.bf16.xpose.msra.mxu0 %v520
    %692 = vmatprep.subr.bf16.mxu0 %v529
    %693 = vmatpush1.bf16.xpose.msra.mxu0 %v528
    %694 = vmatprep.subr.bf16.mxu0 0
    %695 = vmatpush1.bf16.xpose.msra.mxu0 0
    %696 = vmatprep.subr.bf16.mxu0 0
    %697 = vmatpush1.bf16.xpose.msra.mxu0 0
    %698 = vmatprep.subr.bf16.mxu0 0
    %699 = vmatpush1.bf16.xpose.msra.mxu0 0
    %700 = vmatprep.subr.bf16.mxu0 0
    %701 = vmatpush1.bf16.xpose.msra.mxu0 0
    %702 = vmatprep.subr.bf16.mxu0 0
    %703 = vmatpush1.bf16.xpose.msra.mxu0 0
    %704 = vmatprep.subr.bf16.mxu0 0
    %705 = vmatpush1.bf16.xpose.msra.mxu0 0
    %706 = vmatprep.subr.bf16.mxu0 0
    %707 = vmatpush1.bf16.xpose.msra.mxu0 0
    %708 = vmatprep.subr.bf16.mxu0 0
    %709 = vmatpush1.bf16.xpose.msra.mxu0 0
    %710 = vmatprep.mubr.bf16.mxu0 %v266
    %711 = vmatmul.mubr.bf16.gmra.mrb[0].mxu0 %v262
    %v712 = vpop.f32.mrb[0].mxu0
    %v713 = vadd.f32 %v672, %v712
    %v714 = vpop.f32.mrb[0].mxu0
    %v715 = vpop.f32.mrb[0].mxu0
    %v716 = vadd.f32 %v675, %v715
    %v717 = vpop.f32.mrb[0].mxu0
    %718 = vdwg.mxu0
    %719 = vmatprep.subr.bf16.mxu0 %v475
    %720 = vmatpush1.bf16.xpose.msra.mxu0 %v474
    %721 = vmatprep.subr.bf16.mxu0 %v483
    %722 = vmatpush1.bf16.xpose.msra.mxu0 %v482
    %723 = vmatprep.subr.bf16.mxu0 %v491
    %724 = vmatpush1.bf16.xpose.msra.mxu0 %v490
    %725 = vmatprep.subr.bf16.mxu0 %v499
    %726 = vmatpush1.bf16.xpose.msra.mxu0 %v498
    %727 = vmatprep.subr.bf16.mxu0 %v507
    %728 = vmatpush1.bf16.xpose.msra.mxu0 %v506
    %729 = vmatprep.subr.bf16.mxu0 %v515
    %730 = vmatpush1.bf16.xpose.msra.mxu0 %v514
    %731 = vmatprep.subr.bf16.mxu0 %v523
    %732 = vmatpush1.bf16.xpose.msra.mxu0 %v522
    %733 = vmatprep.subr.bf16.mxu0 %v531
    %734 = vmatpush1.bf16.xpose.msra.mxu0 %v530
    %735 = vmatprep.subr.bf16.mxu0 0
    %736 = vmatpush1.bf16.xpose.msra.mxu0 0
    %737 = vmatprep.subr.bf16.mxu0 0
    %738 = vmatpush1.bf16.xpose.msra.mxu0 0
    %739 = vmatprep.subr.bf16.mxu0 0
    %740 = vmatpush1.bf16.xpose.msra.mxu0 0
    %741 = vmatprep.subr.bf16.mxu0 0
    %742 = vmatpush1.bf16.xpose.msra.mxu0 0
    %743 = vmatprep.subr.bf16.mxu0 0
    %744 = vmatpush1.bf16.xpose.msra.mxu0 0
    %745 = vmatprep.subr.bf16.mxu0 0
    %746 = vmatpush1.bf16.xpose.msra.mxu0 0
    %747 = vmatprep.subr.bf16.mxu0 0
    %748 = vmatpush1.bf16.xpose.msra.mxu0 0
    %749 = vmatprep.subr.bf16.mxu0 0
    %750 = vmatpush1.bf16.xpose.msra.mxu0 0
    %751 = vmatprep.mubr.bf16.mxu0 %v267
    %752 = vmatmul.mubr.bf16.gmra.mrb[0].mxu0 %v263
    %v753 = vpop.f32.mrb[0].mxu0
    %v754 = vadd.f32 %v713, %v753
    %v755 = vpop.f32.mrb[0].mxu0
    %v756 = vpop.f32.mrb[0].mxu0
    %v757 = vadd.f32 %v716, %v756
    %v758 = vpop.f32.mrb[0].mxu0
    %759 = vdwg.mxu0
    %v760 = vadd.f32 %v50, %v754
    %v761 = vadd.f32 %v51, %v757
    %762 = vst [vmem:[#allocation2] sm:$0xff] %v760
    %763 = vst [vmem:[#allocation2 + $0x8] sm:$0xff] %v761
    // Predicated region
    $region26: #{tpu_custom_call.1} parent=1 // pred_check
      %p764 = pneg %p44
    $region27: #{tpu_custom_call.1} parent=1 // pred_check_branch
      %766 = sbr.rel (%p764) target = $region29
    $region28: #{tpu_custom_call.1} parent=1 // pred_region
      %v767 = vld [vmem:[#allocation2] sm:$0xff]
      %v768 = vld [vmem:[#allocation2 + $0x8] sm:$0xff]
      %v769 = vld [vmem:[%s2] sm:$0x1]
      %v771 = vlaneseq
      %v772 = vshrl.u32 %v771, 7
      %v773 = vsub.s32 0, %v772
      %v774 = vrot.slane %v769, %v773
      %v776 = vadd.f32 %v767, %v774
      %v777 = vadd.f32 %v768, %v774
      %778 = vst [vmem:[#allocation8] sm:$0xff] %v776
      %779 = vst [vmem:[#allocation8 + $0x8] sm:$0xff] %v777
    $region29: #{tpu_custom_call.1} parent=1 // pred_fallthru
      _
    // Predicated region
    $region30: #{tpu_custom_call.1} parent=1 // pred_check
      _
    $region31: #{tpu_custom_call.1} parent=1 // pred_check_branch
      %781 = sbr.rel (0) target = $region33
    $region32: #{tpu_custom_call.1} parent=1 // pred_region
      %s783 = ssub.s32 256, 32
      %784 = vsyncadd [#allocation5], %s783
      %s785 = sshll.u32 [#allocation8], 4
      %s786 = int_to_ptr.vmem [resolvable:$true] %s785
      %791 = dma.vmem_to_hbm [thread:$0]  %s786, 32, %s3, [#allocation5], 32, 32, 2
    $region33: #{tpu_custom_call.1} parent=1 // pred_fallthru
      _
    // Predicated region
    $region34: #{tpu_custom_call.1} parent=1 // pred_check
      _
    $region35: #{tpu_custom_call.1} parent=1 // pred_check_branch
      %793 = sbr.rel (0) target = $region37
    $region36: #{tpu_custom_call.1} parent=1 // pred_region
      %794 = dma.done [#allocation5], 256
    $region37: #{tpu_custom_call.1} parent=1 // pred_fallthru
      _
    %795 = vsyncpa [#allocation4], 1
    %796 = vsyncpa [#allocation7], 1
    %797 = vsyncpa [#allocation5], 1

</llo_original>
